<compile_context>
chip_gen: v7x
topology: tpu7x:2x2x1
jax: 0.10.0
libtpu: 0.0.40
codegen_flags: <defaults>
</compile_context>

<pallas_src>
import functools

import jax
import jax.numpy as jnp
from jax.experimental import pallas as pl
from jax.experimental.pallas import tpu as pltpu


# ----------------------------------------------------------------------------
# Toy-YOLACT model constants
# ----------------------------------------------------------------------------
NUM_CLASSES = 5          # includes background class 0
MASK_DIM = 8
NUM_AR = 3               # aspect ratios per location
FEAT_H = FEAT_W = 16     # backbone feature map
GRID_H = GRID_W = 4      # prediction-head grid (stride-4 subsample)
NUM_PRIORS = GRID_H * GRID_W * NUM_AR      # 48
HW = FEAT_H * FEAT_W                       # 256

KTAP = 3 * 3 * 3         # 27 im2col columns (3x3 taps x 3 channels)
KPAD = 32                # padded contraction dim for the conv matmul

SLAB_W = 128             # lane-dense packed loss-slab width (per prior)
LOC_OFF = 0              # slab columns 0:4   -> loc predictions
LOCT_OFF = 4             # slab columns 4:8   -> encoded gt boxes (from matching)
POS_OFF = 8              # slab column  8     -> positive mask
LBL_OFF = 9              # slab column  9     -> integer label (as float)
CONF_OFF = 10            # slab columns 10:15 -> conf logits
COEF_OFF = 16            # slab columns 16:24 -> mask coefficients (tanh'd)
HEAD_SLAB = NUM_AR * SLAB_W                # 384: fused head output lanes (slab-ordered)


def _batch_block(n):
    """Largest divisor of n keeping >= 2 grid steps (v7x has 2 TensorCores)."""
    if n <= 1:
        return 1
    b = n // 2
    while n % b:
        b -= 1
    return b


# ----------------------------------------------------------------------------
# Pallas kernel 1: fused Yolact forward (conv stem + protonet + fused heads)
# ----------------------------------------------------------------------------
def _yolact_fused_kernel(colsT_ref, cols4_ref, cwT_ref, cw_ref, cbc_ref, cbr_ref,
                         pwT_ref, pbc_ref, hw_ref, hb_ref, proto_ref, head_ref):
    bblk = colsT_ref.shape[0]
    cwT = cwT_ref[...]            # (32, 32)  bf16  (Cout x Kpad)
    cw = cw_ref[...]              # (32, 32)  bf16  (Kpad x Cout)
    pwT = pwT_ref[...]            # (8, 32)   bf16
    hw = hw_ref[...]              # (32, 384) bf16, slab-ordered columns

    # loop-invariant coef-lane mask (tanh only on the coef lanes), hoisted out of b-loop
    lane = jax.lax.broadcasted_iota(jnp.int32, (GRID_H * GRID_W, HEAD_SLAB), 1) & (SLAB_W - 1)
    is_coef = (lane >= COEF_OFF) & (lane < COEF_OFF + MASK_DIM)

    for b in range(bblk):
        # --- 3x3 conv as ONE K=32 matmul with a lane-dense (32, 256) feature map
        featT = jnp.dot(cwT, colsT_ref[b], preferred_element_type=jnp.float32)
        featT = jnp.maximum(featT + cbc_ref[...], 0.0)                       # relu, (32, 256)

        # --- protonet: 1x1 conv 32 -> MASK_DIM, relu; lane-dense (8, 256) output
        pro = jnp.dot(pwT, featT.astype(jnp.bfloat16),
                      preferred_element_type=jnp.float32) + pbc_ref[...]
        proto_ref[b] = jnp.maximum(pro, 0.0).astype(proto_ref.dtype)         # (8, 256)

        # --- heads at the 16 stride-4 positions: conv recomputed from the tiny
        #     16-row im2col slice, then ONE fused loc|conf|coef matmul whose
        #     384 output lanes are already in loss-slab column order per anchor.
        f4 = jnp.dot(cols4_ref[b], cw, preferred_element_type=jnp.float32)
        f4 = jnp.maximum(f4 + cbr_ref[...], 0.0).astype(jnp.bfloat16)        # (16, 32)
        heads = jnp.dot(f4, hw, preferred_element_type=jnp.float32) + hb_ref[...]  # (16, 384)
        head_ref[b] = jnp.where(is_coef, jnp.tanh(heads), heads)


# ----------------------------------------------------------------------------
# Pallas kernel 2: MultiBox loss (box smooth-L1 + conf CE + lincomb mask BCE)
# ----------------------------------------------------------------------------
def _multibox_loss_kernel(slab_ref, proto_ref, maskt_ref, out_ref, *,
                          num_classes, mask_dim, coef_off):
    bblk = slab_ref.shape[0]
    loss_b = jnp.zeros((), jnp.float32)
    loss_c = jnp.zeros((), jnp.float32)
    loss_m = jnp.zeros((), jnp.float32)
    npos = jnp.zeros((), jnp.float32)

    for b in range(bblk):
        slab = slab_ref[b]                                   # (P, 128) f32
        loc_p = slab[:, LOC_OFF:LOC_OFF + 4]
        loc_t = slab[:, LOCT_OFF:LOCT_OFF + 4]
        pos = slab[:, POS_OFF:POS_OFF + 1]                   # (P, 1) float {0,1}
        labels = slab[:, LBL_OFF:LBL_OFF + 1].astype(jnp.int32)
        logits = slab[:, CONF_OFF:CONF_OFF + num_classes]    # (P, C)
        coef = slab[:, coef_off:coef_off + mask_dim]         # (P, K)

        # --- localization: smooth L1 over positive priors ---------------------
        d = loc_p - loc_t
        ad = jnp.abs(d)
        sl1 = jnp.where(ad < 1.0, 0.5 * d * d, ad - 0.5)
        loss_b = loss_b + jnp.sum(sl1 * pos)

        # --- confidence: softmax cross-entropy vs integer labels --------------
        mx = jnp.max(logits, axis=-1, keepdims=True)
        lse = mx + jnp.log(jnp.sum(jnp.exp(logits - mx), axis=-1, keepdims=True))
        cls = jax.lax.broadcasted_iota(jnp.int32, logits.shape, 1)
        tgt = jnp.sum(jnp.where(cls == labels, logits, 0.0), axis=-1, keepdims=True)
        loss_c = loss_c + jnp.sum(lse - tgt)

        # --- lincomb mask loss: sigmoid(coef @ protoT) vs gt mask, stable BCE --
        #     protoT is (K, HW) -> plain NN matmul, lane-dense (P, HW) result.
        mpred = jnp.dot(coef.astype(jnp.bfloat16), proto_ref[b],
                        preferred_element_type=jnp.float32)                  # (P, HW)
        mt = maskt_ref[b].astype(jnp.float32)
        bce = (jnp.maximum(mpred, 0.0) - mpred * mt
               + jnp.log1p(jnp.exp(-jnp.abs(mpred))))
        loss_m = loss_m + jnp.sum(bce * pos)
        npos = npos + jnp.sum(pos)

    lane = jax.lax.broadcasted_iota(jnp.int32, (1, SLAB_W), 1)
    out_ref[0] = (jnp.where(lane == 0, loss_b, 0.0)
                  + jnp.where(lane == 1, loss_c, 0.0)
                  + jnp.where(lane == 2, loss_m, 0.0)
                  + jnp.where(lane == 3, npos, 0.0))


# ----------------------------------------------------------------------------
# Parameters
# ----------------------------------------------------------------------------
def init_params(key):
    ks = jax.random.split(key, 5)
    p = {}
    p["conv_w"] = 0.1 * jax.random.normal(ks[0], (KTAP, 32), jnp.float32)
    p["conv_b"] = jnp.zeros((32,), jnp.float32)
    p["proto_w"] = 0.1 * jax.random.normal(ks[1], (32, MASK_DIM), jnp.float32)
    p["proto_b"] = jnp.zeros((MASK_DIM,), jnp.float32)
    p["loc_w"] = 0.1 * jax.random.normal(ks[2], (32, NUM_AR * 4), jnp.float32)
    p["loc_b"] = jnp.zeros((NUM_AR * 4,), jnp.float32)
    p["conf_w"] = 0.1 * jax.random.normal(ks[3], (32, NUM_AR * NUM_CLASSES), jnp.float32)
    p["conf_b"] = jnp.zeros((NUM_AR * NUM_CLASSES,), jnp.float32)
    p["mask_w"] = 0.1 * jax.random.normal(ks[4], (32, NUM_AR * MASK_DIM), jnp.float32)
    p["mask_b"] = jnp.zeros((NUM_AR * MASK_DIM,), jnp.float32)
    return p


# ----------------------------------------------------------------------------
# Yolact forward (wrapper: im2col / weight layout plumbing; compute in one pallas_call)
# ----------------------------------------------------------------------------
def yolact_forward(params, images_nchw):
    N = images_nchw.shape[0]
    bblk = _batch_block(N)

    # -- wrapper-side im2col: (N, HW, 27) padded to K=32, passed bf16 & transposed
    x = jnp.transpose(images_nchw, (0, 2, 3, 1))                        # NCHW -> NHWC
    xp = jnp.pad(x, ((0, 0), (1, 1), (1, 1), (0, 0)))                   # (N, 18, 18, 3)
    patches = [xp[:, dy:dy + FEAT_H, dx:dx + FEAT_W, :]
               for dy in range(3) for dx in range(3)]
    cols = jnp.concatenate(patches, axis=-1).reshape(N, HW, KTAP)       # (N, 256, 27)
    cols = jnp.pad(cols, ((0, 0), (0, 0), (0, KPAD - KTAP)))            # (N, 256, 32)
    colsT = jnp.transpose(cols, (0, 2, 1)).astype(jnp.bfloat16)         # (N, 32, 256)

    # second im2col slice at the 16 stride-4 head positions (replaces sel2 one-hot)
    gy = jnp.arange(GRID_H) * (FEAT_H // GRID_H)
    gx = jnp.arange(GRID_W) * (FEAT_W // GRID_W)
    pos_idx = (gy[:, None] * FEAT_W + gx[None, :]).reshape(-1)          # (16,)
    cols4 = cols[:, pos_idx, :].astype(jnp.bfloat16)                    # (N, 16, 32)

    # -- weights, pre-cast bf16, fused head weights in loss-slab column order
    cw = jnp.pad(params["conv_w"], ((0, KPAD - KTAP), (0, 0))).astype(jnp.bfloat16)  # (32,32)
    cwT = jnp.transpose(cw)                                                          # (32,32)
    cb_col = params["conv_b"].reshape(32, 1)
    cb_row = params["conv_b"].reshape(1, 32)
    pwT = jnp.transpose(params["proto_w"]).astype(jnp.bfloat16)                      # (8,32)
    pb_col = params["proto_b"].reshape(MASK_DIM, 1)

    def w_to_slab(w, off, width):      # w: (32, NUM_AR*width) -> (32, NUM_AR, SLAB_W)
        z = jnp.zeros((32, NUM_AR, SLAB_W), w.dtype)
        return z.at[:, :, off:off + width].set(w.reshape(32, NUM_AR, width))

    def b_to_slab(bv, off, width):     # bv: (NUM_AR*width,) -> (NUM_AR, SLAB_W)
        z = jnp.zeros((NUM_AR, SLAB_W), bv.dtype)
        return z.at[:, off:off + width].set(bv.reshape(NUM_AR, width))

    head_w = (w_to_slab(params["loc_w"], LOC_OFF, 4)
              + w_to_slab(params["conf_w"], CONF_OFF, NUM_CLASSES)
              + w_to_slab(params["mask_w"], COEF_OFF, MASK_DIM)
              ).reshape(32, HEAD_SLAB).astype(jnp.bfloat16)
    head_b = (b_to_slab(params["loc_b"], LOC_OFF, 4)
              + b_to_slab(params["conf_b"], CONF_OFF, NUM_CLASSES)
              + b_to_slab(params["mask_b"], COEF_OFF, MASK_DIM)
              ).reshape(1, HEAD_SLAB)

    protoT, heads = pl.pallas_call(
        _yolact_fused_kernel,
        out_shape=(jax.ShapeDtypeStruct((N, MASK_DIM, HW), jnp.bfloat16),
                   jax.ShapeDtypeStruct((N, GRID_H * GRID_W, HEAD_SLAB), jnp.float32)),
        grid=(N // bblk,),
        in_specs=[
            pl.BlockSpec((bblk, KPAD, HW), lambda i: (i, 0, 0)),
            pl.BlockSpec((bblk, GRID_H * GRID_W, KPAD), lambda i: (i, 0, 0)),
            pl.BlockSpec((KPAD, 32), lambda i: (0, 0)),
            pl.BlockSpec((KPAD, 32), lambda i: (0, 0)),
            pl.BlockSpec((32, 1), lambda i: (0, 0)),
            pl.BlockSpec((1, 32), lambda i: (0, 0)),
            pl.BlockSpec((MASK_DIM, 32), lambda i: (0, 0)),
            pl.BlockSpec((MASK_DIM, 1), lambda i: (0, 0)),
            pl.BlockSpec((32, HEAD_SLAB), lambda i: (0, 0)),
            pl.BlockSpec((1, HEAD_SLAB), lambda i: (0, 0)),
        ],
        out_specs=(pl.BlockSpec((bblk, MASK_DIM, HW), lambda i: (i, 0, 0)),
                   pl.BlockSpec((bblk, GRID_H * GRID_W, HEAD_SLAB), lambda i: (i, 0, 0))),
        compiler_params=pltpu.CompilerParams(dimension_semantics=("parallel",)),
    )(colsT, cols4, cwT, cw, cb_col, cb_row, pwT, pb_col, head_w, head_b)

    # free reshape: (N, 16, 3*128) -> (N, 48, 128) rows already in slab column order
    head_rows = heads.reshape(N, NUM_PRIORS, SLAB_W)
    return {"head_rows": head_rows, "proto": protoT}


# ----------------------------------------------------------------------------
# MultiBoxLoss glue: priors, IoU matching, SSD encoding (plain JAX), then kernel
# ----------------------------------------------------------------------------
def make_priors():
    ys, xs = jnp.meshgrid(jnp.arange(GRID_H), jnp.arange(GRID_W), indexing="ij")
    cx = (xs.astype(jnp.float32) + 0.5) / GRID_W
    cy = (ys.astype(jnp.float32) + 0.5) / GRID_H
    ars = jnp.array([1.0, 0.5, 2.0], jnp.float32)
    scale = 0.4
    w = scale * jnp.sqrt(ars)
    h = scale / jnp.sqrt(ars)
    cx = jnp.broadcast_to(cx[..., None], (GRID_H, GRID_W, NUM_AR))
    cy = jnp.broadcast_to(cy[..., None], (GRID_H, GRID_W, NUM_AR))
    w = jnp.broadcast_to(w, (GRID_H, GRID_W, NUM_AR))
    h = jnp.broadcast_to(h, (GRID_H, GRID_W, NUM_AR))
    return jnp.stack([cx, cy, w, h], axis=-1).reshape(-1, 4)      # (48, 4) cxcywh


def point_form(p):  # cxcywh -> xyxy
    return jnp.concatenate([p[:, :2] - p[:, 2:] / 2, p[:, :2] + p[:, 2:] / 2], axis=1)


def iou(a, b):  # a:(P,4) xyxy, b:(G,4) xyxy -> (P,G)
    tl = jnp.maximum(a[:, None, :2], b[None, :, :2])
    br = jnp.minimum(a[:, None, 2:], b[None, :, 2:])
    wh = jnp.clip(br - tl, 0.0, None)
    inter = wh[..., 0] * wh[..., 1]
    area_a = (a[:, 2] - a[:, 0]) * (a[:, 3] - a[:, 1])
    area_b = (b[:, 2] - b[:, 0]) * (b[:, 3] - b[:, 1])
    return inter / jnp.maximum(area_a[:, None] + area_b[None, :] - inter, 1e-9)


def encode(matched_xyxy, priors_cs):
    g_c = (matched_xyxy[:, :2] + matched_xyxy[:, 2:]) / 2 - priors_cs[:, :2]
    g_c = g_c / (0.1 * priors_cs[:, 2:])
    g_wh = (matched_xyxy[:, 2:] - matched_xyxy[:, :2]) / priors_cs[:, 2:]
    g_wh = jnp.log(jnp.maximum(g_wh, 1e-6)) / 0.2
    return jnp.concatenate([g_c, g_wh], axis=1)


def match_one(priors_cs, priors_pt, gt_boxes, gt_labels):
    G = gt_boxes.shape[0]
    ov = iou(priors_pt, gt_boxes)                                # (P, G)
    best_gt_iou = ov.max(axis=1)
    best_gt_idx = ov.argmax(axis=1)
    best_prior_idx = ov.argmax(axis=0)                           # (G,)
    best_gt_iou = best_gt_iou.at[best_prior_idx].set(2.0)
    best_gt_idx = best_gt_idx.at[best_prior_idx].set(jnp.arange(G))
    pos = best_gt_iou > 0.5
    matched = gt_boxes[best_gt_idx]                              # (P, 4)
    labels = jnp.where(pos, gt_labels[best_gt_idx], 0)
    loc_t = encode(matched, priors_cs)
    return loc_t, labels, pos.astype(jnp.float32), best_gt_idx


def multibox_loss_sums(slab, protoT, mask_t):
    """slab: (N,P,128) f32 in slab layout; protoT: (N,K,HW) bf16; mask_t: (N,P,HW) bf16.
    Returns (4,): [sum_smoothL1, sum_CE, sum_maskBCE, num_pos]."""
    N, P, _ = slab.shape
    K = protoT.shape[1]
    hw = protoT.shape[2]
    bblk = _batch_block(N)
    nblk = N // bblk

    out = pl.pallas_call(
        functools.partial(_multibox_loss_kernel, num_classes=NUM_CLASSES,
                          mask_dim=K, coef_off=COEF_OFF),
        out_shape=jax.ShapeDtypeStruct((nblk, 1, SLAB_W), jnp.float32),
        grid=(nblk,),
        in_specs=[
            pl.BlockSpec((bblk, P, SLAB_W), lambda i: (i, 0, 0)),
            pl.BlockSpec((bblk, K, hw), lambda i: (i, 0, 0)),
            pl.BlockSpec((bblk, P, hw), lambda i: (i, 0, 0)),
        ],
        out_specs=pl.BlockSpec((1, 1, SLAB_W), lambda i: (i, 0, 0)),
        compiler_params=pltpu.CompilerParams(dimension_semantics=("parallel",)),
    )(slab, protoT, mask_t)
    return jnp.sum(out[:, 0, :4], axis=0)


def netloss_forward(params, images, targets_boxes, targets_labels, gt_masks, num_crowds):
    """Equivalent of NetLoss.forward: preds = net(images); losses = criterion(...)."""
    del num_crowds  # TODO(synk): crowd annotations ignored in this simplified MultiBoxLoss
    preds = yolact_forward(params, images)

    priors_cs = make_priors()
    priors_pt = point_form(priors_cs)

    loc_t, labels, pos, gt_idx = jax.vmap(
        lambda b, l: match_one(priors_cs, priors_pt, b, l))(targets_boxes, targets_labels)

    masks_flat = gt_masks.reshape(gt_masks.shape[0], gt_masks.shape[1], -1)   # (N, G, HW)
    mask_t = jax.vmap(lambda m, idx: m[idx])(masks_flat, gt_idx)              # (N, P, HW)
    mask_t = mask_t.astype(jnp.bfloat16)                                      # {0,1} -> exact

    # match-derived columns only (net outputs are already in slab layout): one add.
    N = images.shape[0]
    match_cols = jnp.concatenate([
        jnp.zeros((N, NUM_PRIORS, 4), jnp.float32), loc_t,
        pos[..., None], labels[..., None].astype(jnp.float32),
        jnp.zeros((N, NUM_PRIORS, SLAB_W - 10), jnp.float32)], axis=-1)
    slab = preds["head_rows"] + match_cols                                    # (N, P, 128)

    sums = multibox_loss_sums(slab, preds["proto"], mask_t)

    num_pos = jnp.maximum(sums[3], 1.0)
    losses = {
        "B": 1.5 * sums[0] / num_pos,          # bbox_alpha
        "C": 1.0 * sums[1] / num_pos,          # conf_alpha
        "M": 6.125 * sums[2] / num_pos,        # mask_alpha
    }
    return losses


# ----------------------------------------------------------------------------
# Main
# ----------------------------------------------------------------------------
if __name__ == "__main__":
    key = jax.random.PRNGKey(0)
    pkey, ikey = jax.random.split(key)
    params = init_params(pkey)

    N = 2
    images = jax.random.normal(ikey, (N, 3, FEAT_H, FEAT_W), jnp.float32)  # NCHW input

    # deterministic targets: 2 gt boxes per image (xyxy, normalized) + labels
    targets_boxes = jnp.array(
        [[[0.10, 0.10, 0.50, 0.60], [0.55, 0.30, 0.95, 0.90]],
         [[0.20, 0.20, 0.80, 0.80], [0.05, 0.60, 0.40, 0.95]]], jnp.float32)
    targets_labels = jnp.array([[1, 3], [2, 4]], jnp.int32)

    # gt masks: box-fill binary masks on the 16x16 proto grid
    yy, xx = jnp.meshgrid((jnp.arange(FEAT_H) + 0.5) / FEAT_H,
                          (jnp.arange(FEAT_W) + 0.5) / FEAT_W, indexing="ij")

    def box_mask(box):
        return ((xx >= box[0]) & (xx <= box[2]) &
                (yy >= box[1]) & (yy <= box[3])).astype(jnp.float32)

    gt_masks = jax.vmap(jax.vmap(box_mask))(targets_boxes)        # (N, 2, 16, 16)
    num_crowds = jnp.zeros((N,), jnp.int32)

    losses = jax.jit(netloss_forward)(params, images, targets_boxes,
                                      targets_labels, gt_masks, num_crowds)
    losses = jax.tree_util.tree_map(jax.block_until_ready, losses)

    for k in ("B", "C", "M"):
        v = float(losses[k])
        assert jnp.isfinite(v), f"loss {k} not finite"
    print("KERNEL_OK")
</pallas_src>

<mosaic_0001>
module attributes {stable_mosaic.version = 11 : i64} {
  func.func @_yolact_fused_kernel(%arg0: i32, %arg1: memref<1x32x256xbf16, #tpu.memory_space<vmem>>, %arg2: memref<1x16x32xbf16, #tpu.memory_space<vmem>>, %arg3: memref<32x32xbf16, #tpu.memory_space<vmem>>, %arg4: memref<32x32xbf16, #tpu.memory_space<vmem>>, %arg5: memref<32x1xf32, #tpu.memory_space<vmem>>, %arg6: memref<1x32xf32, #tpu.memory_space<vmem>>, %arg7: memref<8x32xbf16, #tpu.memory_space<vmem>>, %arg8: memref<8x1xf32, #tpu.memory_space<vmem>>, %arg9: memref<32x384xbf16, #tpu.memory_space<vmem>>, %arg10: memref<1x384xf32, #tpu.memory_space<vmem>>, %arg11: memref<1x8x256xbf16, #tpu.memory_space<vmem>>, %arg12: memref<1x16x384xf32, #tpu.memory_space<vmem>>) attributes {dimension_semantics = [#tpu.dimension_semantics<parallel>], iteration_bounds = array<i64: 2>, scalar_prefetch = 0 : i64, scratch_operands = 0 : i64, tpu.core_type = #tpu.core_type<tc>, window_params = [{transform_indices = @transform_0, window_bounds = array<i64: 1, 32, 256>}, {transform_indices = @transform_1, window_bounds = array<i64: 1, 16, 32>}, {pipeline_mode = #tpu.pipeline_mode<synchronous>, transform_indices = @transform_2, window_bounds = array<i64: 32, 32>}, {pipeline_mode = #tpu.pipeline_mode<synchronous>, transform_indices = @transform_3, window_bounds = array<i64: 32, 32>}, {pipeline_mode = #tpu.pipeline_mode<synchronous>, transform_indices = @transform_4, window_bounds = array<i64: 32, 1>}, {pipeline_mode = #tpu.pipeline_mode<synchronous>, transform_indices = @transform_5, window_bounds = array<i64: 1, 32>}, {pipeline_mode = #tpu.pipeline_mode<synchronous>, transform_indices = @transform_6, window_bounds = array<i64: 8, 32>}, {pipeline_mode = #tpu.pipeline_mode<synchronous>, transform_indices = @transform_7, window_bounds = array<i64: 8, 1>}, {pipeline_mode = #tpu.pipeline_mode<synchronous>, transform_indices = @transform_8, window_bounds = array<i64: 32, 384>}, {pipeline_mode = #tpu.pipeline_mode<synchronous>, transform_indices = @transform_9, window_bounds = array<i64: 1, 384>}, {transform_indices = @transform_10, window_bounds = array<i64: 1, 8, 256>}, {transform_indices = @transform_11, window_bounds = array<i64: 1, 16, 384>}]} {
    %c0 = arith.constant 0 : index
    %c0_0 = arith.constant 0 : index
    %0 = vector.load %arg3[%c0, %c0_0] : memref<32x32xbf16, #tpu.memory_space<vmem>>, vector<32x32xbf16>
    %c0_1 = arith.constant 0 : index
    %c0_2 = arith.constant 0 : index
    %1 = vector.load %arg4[%c0_1, %c0_2] : memref<32x32xbf16, #tpu.memory_space<vmem>>, vector<32x32xbf16>
    %c0_3 = arith.constant 0 : index
    %c0_4 = arith.constant 0 : index
    %2 = vector.load %arg7[%c0_3, %c0_4] : memref<8x32xbf16, #tpu.memory_space<vmem>>, vector<8x32xbf16>
    %c0_5 = arith.constant 0 : index
    %c0_6 = arith.constant 0 : index
    %3 = vector.load %arg9[%c0_5, %c0_6] : memref<32x384xbf16, #tpu.memory_space<vmem>>, vector<32x384xbf16>
    %4 = tpu.iota {dimensions = array<i32: 1>} : vector<16x384xi32>
    %c127_i32 = arith.constant 127 : i32
    %5 = vector.broadcast %c127_i32 : i32 to vector<16x384xi32>
    %6 = arith.andi %4, %5 : vector<16x384xi32>
    %c16_i32 = arith.constant 16 : i32
    %7 = vector.broadcast %c16_i32 : i32 to vector<16x384xi32>
    %8 = arith.cmpi sge, %6, %7 : vector<16x384xi32>
    %c24_i32 = arith.constant 24 : i32
    %9 = vector.broadcast %c24_i32 : i32 to vector<16x384xi32>
    %10 = arith.cmpi slt, %6, %9 : vector<16x384xi32>
    %11 = arith.andi %8, %10 : vector<16x384xi1>
    %c0_7 = arith.constant 0 : index
    %c0_8 = arith.constant 0 : index
    %c0_9 = arith.constant 0 : index
    %12 = vector.load %arg1[%c0_7, %c0_8, %c0_9] : memref<1x32x256xbf16, #tpu.memory_space<vmem>>, vector<1x32x256xbf16>
    %13 = vector.shape_cast %12 : vector<1x32x256xbf16> to vector<32x256xbf16>
    %cst = arith.constant dense<0.000000e+00> : vector<32x256xf32>
    %14 = tpu.matmul %0, %13, %cst {dimension_numbers = #tpu.dot_dimension_numbers<[1], [0], [0], [1], [0, 0, 1, 1], [], []>} : vector<32x32xbf16>, vector<32x256xbf16>, vector<32x256xf32> -> vector<32x256xf32>
    %c0_10 = arith.constant 0 : index
    %c0_11 = arith.constant 0 : index
    %15 = vector.load %arg5[%c0_10, %c0_11] : memref<32x1xf32, #tpu.memory_space<vmem>>, vector<32x1xf32>
    %16 = vector.broadcast %15 : vector<32x1xf32> to vector<32x256xf32>
    %17 = arith.addf %14, %16 : vector<32x256xf32>
    %cst_12 = arith.constant 0.000000e+00 : f32
    %18 = vector.broadcast %cst_12 : f32 to vector<32x256xf32>
    %19 = arith.maximumf %17, %18 : vector<32x256xf32>
    %20 = arith.truncf %19 : vector<32x256xf32> to vector<32x256xbf16>
    %cst_13 = arith.constant dense<0.000000e+00> : vector<8x256xf32>
    %21 = tpu.matmul %2, %20, %cst_13 {dimension_numbers = #tpu.dot_dimension_numbers<[1], [0], [0], [1], [0, 0, 1, 1], [], []>} : vector<8x32xbf16>, vector<32x256xbf16>, vector<8x256xf32> -> vector<8x256xf32>
    %c0_14 = arith.constant 0 : index
    %c0_15 = arith.constant 0 : index
    %22 = vector.load %arg8[%c0_14, %c0_15] : memref<8x1xf32, #tpu.memory_space<vmem>>, vector<8x1xf32>
    %23 = vector.broadcast %22 : vector<8x1xf32> to vector<8x256xf32>
    %24 = arith.addf %21, %23 : vector<8x256xf32>
    %cst_16 = arith.constant 0.000000e+00 : f32
    %25 = vector.broadcast %cst_16 : f32 to vector<8x256xf32>
    %26 = arith.maximumf %24, %25 : vector<8x256xf32>
    %27 = arith.truncf %26 : vector<8x256xf32> to vector<8x256xbf16>
    %c0_17 = arith.constant 0 : index
    %c0_18 = arith.constant 0 : index
    %c0_19 = arith.constant 0 : index
    %28 = vector.load %arg11[%c0_17, %c0_18, %c0_19] : memref<1x8x256xbf16, #tpu.memory_space<vmem>>, vector<1x8x256xbf16>
    %29 = vector.shape_cast %28 : vector<1x8x256xbf16> to vector<8x256xbf16>
    %30 = vector.shape_cast %27 : vector<8x256xbf16> to vector<1x8x256xbf16>
    tpu.vector_store %arg11[%c0_17, %c0_18, %c0_19], %30 {strides = array<i32>} : memref<1x8x256xbf16, #tpu.memory_space<vmem>>, vector<1x8x256xbf16>,
    %c0_20 = arith.constant 0 : index
    %c0_21 = arith.constant 0 : index
    %c0_22 = arith.constant 0 : index
    %31 = vector.load %arg2[%c0_20, %c0_21, %c0_22] : memref<1x16x32xbf16, #tpu.memory_space<vmem>>, vector<1x16x32xbf16>
    %32 = vector.shape_cast %31 : vector<1x16x32xbf16> to vector<16x32xbf16>
    %cst_23 = arith.constant dense<0.000000e+00> : vector<16x32xf32>
    %33 = tpu.matmul %32, %1, %cst_23 {dimension_numbers = #tpu.dot_dimension_numbers<[1], [0], [0], [1], [0, 0, 1, 1], [], []>} : vector<16x32xbf16>, vector<32x32xbf16>, vector<16x32xf32> -> vector<16x32xf32>
    %c0_24 = arith.constant 0 : index
    %c0_25 = arith.constant 0 : index
    %34 = vector.load %arg6[%c0_24, %c0_25] : memref<1x32xf32, #tpu.memory_space<vmem>>, vector<1x32xf32>
    %35 = vector.broadcast %34 : vector<1x32xf32> to vector<16x32xf32>
    %36 = arith.addf %33, %35 : vector<16x32xf32>
    %cst_26 = arith.constant 0.000000e+00 : f32
    %37 = vector.broadcast %cst_26 : f32 to vector<16x32xf32>
    %38 = arith.maximumf %36, %37 : vector<16x32xf32>
    %39 = arith.truncf %38 : vector<16x32xf32> to vector<16x32xbf16>
    %cst_27 = arith.constant dense<0.000000e+00> : vector<16x384xf32>
    %40 = tpu.matmul %39, %3, %cst_27 {dimension_numbers = #tpu.dot_dimension_numbers<[1], [0], [0], [1], [0, 0, 1, 1], [], []>} : vector<16x32xbf16>, vector<32x384xbf16>, vector<16x384xf32> -> vector<16x384xf32>
    %c0_28 = arith.constant 0 : index
    %c0_29 = arith.constant 0 : index
    %41 = vector.load %arg10[%c0_28, %c0_29] : memref<1x384xf32, #tpu.memory_space<vmem>>, vector<1x384xf32>
    %42 = vector.broadcast %41 : vector<1x384xf32> to vector<16x384xf32>
    %43 = arith.addf %40, %42 : vector<16x384xf32>
    %44 = math.tanh %43 : vector<16x384xf32>
    %45 = arith.select %11, %44, %43 : vector<16x384xi1>, vector<16x384xf32>
    %c0_30 = arith.constant 0 : index
    %c0_31 = arith.constant 0 : index
    %c0_32 = arith.constant 0 : index
    %46 = vector.load %arg12[%c0_30, %c0_31, %c0_32] : memref<1x16x384xf32, #tpu.memory_space<vmem>>, vector<1x16x384xf32>
    %47 = vector.shape_cast %46 : vector<1x16x384xf32> to vector<16x384xf32>
    %48 = vector.shape_cast %45 : vector<16x384xf32> to vector<1x16x384xf32>
    tpu.vector_store %arg12[%c0_30, %c0_31, %c0_32], %48 {strides = array<i32>} : memref<1x16x384xf32, #tpu.memory_space<vmem>>, vector<1x16x384xf32>,
    return
  }
  func.func @transform_0(%arg0: i32) -> (i32, i32, i32) {
    %c0_i32 = arith.constant 0 : i32
    %c0_i32_0 = arith.constant 0 : i32
    %c0_i32_1 = arith.constant 0 : i32
    return %arg0, %c0_i32, %c0_i32_0 : i32, i32, i32
  }
  func.func @transform_1(%arg0: i32) -> (i32, i32, i32) {
    %c0_i32 = arith.constant 0 : i32
    %c0_i32_0 = arith.constant 0 : i32
    %c0_i32_1 = arith.constant 0 : i32
    return %arg0, %c0_i32, %c0_i32_0 : i32, i32, i32
  }
  func.func @transform_2(%arg0: i32) -> (i32, i32) {
    %c0_i32 = arith.constant 0 : i32
    %c0_i32_0 = arith.constant 0 : i32
    %c0_i32_1 = arith.constant 0 : i32
    return %c0_i32, %c0_i32_0 : i32, i32
  }
  func.func @transform_3(%arg0: i32) -> (i32, i32) {
    %c0_i32 = arith.constant 0 : i32
    %c0_i32_0 = arith.constant 0 : i32
    %c0_i32_1 = arith.constant 0 : i32
    return %c0_i32, %c0_i32_0 : i32, i32
  }
  func.func @transform_4(%arg0: i32) -> (i32, i32) {
    %c0_i32 = arith.constant 0 : i32
    %c0_i32_0 = arith.constant 0 : i32
    %c0_i32_1 = arith.constant 0 : i32
    return %c0_i32, %c0_i32_0 : i32, i32
  }
  func.func @transform_5(%arg0: i32) -> (i32, i32) {
    %c0_i32 = arith.constant 0 : i32
    %c0_i32_0 = arith.constant 0 : i32
    %c0_i32_1 = arith.constant 0 : i32
    return %c0_i32, %c0_i32_0 : i32, i32
  }
  func.func @transform_6(%arg0: i32) -> (i32, i32) {
    %c0_i32 = arith.constant 0 : i32
    %c0_i32_0 = arith.constant 0 : i32
    %c0_i32_1 = arith.constant 0 : i32
    return %c0_i32, %c0_i32_0 : i32, i32
  }
  func.func @transform_7(%arg0: i32) -> (i32, i32) {
    %c0_i32 = arith.constant 0 : i32
    %c0_i32_0 = arith.constant 0 : i32
    %c0_i32_1 = arith.constant 0 : i32
    return %c0_i32, %c0_i32_0 : i32, i32
  }
  func.func @transform_8(%arg0: i32) -> (i32, i32) {
    %c0_i32 = arith.constant 0 : i32
    %c0_i32_0 = arith.constant 0 : i32
    %c0_i32_1 = arith.constant 0 : i32
    return %c0_i32, %c0_i32_0 : i32, i32
  }
  func.func @transform_9(%arg0: i32) -> (i32, i32) {
    %c0_i32 = arith.constant 0 : i32
    %c0_i32_0 = arith.constant 0 : i32
    %c0_i32_1 = arith.constant 0 : i32
    return %c0_i32, %c0_i32_0 : i32, i32
  }
  func.func @transform_10(%arg0: i32) -> (i32, i32, i32) {
    %c0_i32 = arith.constant 0 : i32
    %c0_i32_0 = arith.constant 0 : i32
    %c0_i32_1 = arith.constant 0 : i32
    return %arg0, %c0_i32, %c0_i32_0 : i32, i32, i32
  }
  func.func @transform_11(%arg0: i32) -> (i32, i32, i32) {
    %c0_i32 = arith.constant 0 : i32
    %c0_i32_0 = arith.constant 0 : i32
    %c0_i32_1 = arith.constant 0 : i32
    return %arg0, %c0_i32, %c0_i32_0 : i32, i32, i32
  }
}

module attributes {stable_mosaic.version = 11 : i64} {
  func.func @_multibox_loss_kernel(%arg0: i32, %arg1: memref<1x48x128xf32, #tpu.memory_space<vmem>>, %arg2: memref<1x8x256xbf16, #tpu.memory_space<vmem>>, %arg3: memref<1x48x256xbf16, #tpu.memory_space<vmem>>, %arg4: memref<1x1x128xf32, #tpu.memory_space<vmem>>) attributes {dimension_semantics = [#tpu.dimension_semantics<parallel>], iteration_bounds = array<i64: 2>, scalar_prefetch = 0 : i64, scratch_operands = 0 : i64, tpu.core_type = #tpu.core_type<tc>, window_params = [{transform_indices = @transform_0, window_bounds = array<i64: 1, 48, 128>}, {transform_indices = @transform_1, window_bounds = array<i64: 1, 8, 256>}, {transform_indices = @transform_2, window_bounds = array<i64: 1, 48, 256>}, {transform_indices = @transform_3, window_bounds = array<i64: 1, 1, 128>}]} {
    %c0 = arith.constant 0 : index
    %c0_0 = arith.constant 0 : index
    %c0_1 = arith.constant 0 : index
    %0 = vector.load %arg1[%c0, %c0_0, %c0_1] : memref<1x48x128xf32, #tpu.memory_space<vmem>>, vector<1x48x128xf32>
    %1 = vector.shape_cast %0 : vector<1x48x128xf32> to vector<48x128xf32>
    %2 = vector.extract_strided_slice %1 {offsets = [0, 0], sizes = [48, 4], strides = [1, 1]} : vector<48x128xf32> to vector<48x4xf32>
    %3 = vector.extract_strided_slice %1 {offsets = [0, 4], sizes = [48, 4], strides = [1, 1]} : vector<48x128xf32> to vector<48x4xf32>
    %4 = vector.extract_strided_slice %1 {offsets = [0, 8], sizes = [48, 1], strides = [1, 1]} : vector<48x128xf32> to vector<48x1xf32>
    %5 = vector.extract_strided_slice %1 {offsets = [0, 9], sizes = [48, 1], strides = [1, 1]} : vector<48x128xf32> to vector<48x1xf32>
    %6 = arith.fptosi %5 : vector<48x1xf32> to vector<48x1xi32>
    %7 = vector.extract_strided_slice %1 {offsets = [0, 10], sizes = [48, 5], strides = [1, 1]} : vector<48x128xf32> to vector<48x5xf32>
    %8 = vector.extract_strided_slice %1 {offsets = [0, 16], sizes = [48, 8], strides = [1, 1]} : vector<48x128xf32> to vector<48x8xf32>
    %9 = arith.subf %2, %3 : vector<48x4xf32>
    %10 = math.absf %9 : vector<48x4xf32>
    %cst = arith.constant 1.000000e+00 : f32
    %11 = vector.broadcast %cst : f32 to vector<48x4xf32>
    %12 = arith.cmpf olt, %10, %11 : vector<48x4xf32>
    %cst_2 = arith.constant 5.000000e-01 : f32
    %13 = vector.broadcast %cst_2 : f32 to vector<48x4xf32>
    %14 = arith.mulf %13, %9 : vector<48x4xf32>
    %15 = arith.mulf %14, %9 : vector<48x4xf32>
    %cst_3 = arith.constant 5.000000e-01 : f32
    %16 = vector.broadcast %cst_3 : f32 to vector<48x4xf32>
    %17 = arith.subf %10, %16 : vector<48x4xf32>
    %18 = arith.select %12, %15, %17 : vector<48x4xi1>, vector<48x4xf32>
    %19 = vector.broadcast %4 : vector<48x1xf32> to vector<48x4xf32>
    %20 = arith.mulf %18, %19 : vector<48x4xf32>
    %21 = vector.shape_cast %20 : vector<48x4xf32> to vector<1x48x4xf32>
    %cst_4 = arith.constant dense<0.000000e+00> : vector<1xf32>
    %22 = vector.multi_reduction <add>, %21, %cst_4 [1, 2] : vector<1x48x4xf32> to vector<1xf32>
    %23 = vector.shape_cast %22 : vector<1xf32> to vector<1x1x1xf32>
    %24 = vector.extract %23[0, 0, 0] : f32 from vector<1x1x1xf32>
    %cst_5 = arith.constant 0.000000e+00 : f32
    %25 = arith.addf %cst_5, %24 : f32
    %cst_6 = arith.constant dense<0xFF800000> : vector<48xf32>
    %26 = vector.multi_reduction <maximumf>, %7, %cst_6 [1] : vector<48x5xf32> to vector<48xf32>
    %27 = vector.shape_cast %26 : vector<48xf32> to vector<48x1xf32>
    %28 = vector.broadcast %27 : vector<48x1xf32> to vector<48x5xf32>
    %29 = arith.subf %7, %28 : vector<48x5xf32>
    %30 = math.exp %29 : vector<48x5xf32>
    %cst_7 = arith.constant dense<0.000000e+00> : vector<48xf32>
    %31 = vector.multi_reduction <add>, %30, %cst_7 [1] : vector<48x5xf32> to vector<48xf32>
    %32 = vector.shape_cast %31 : vector<48xf32> to vector<48x1xf32>
    %33 = math.log %32 : vector<48x1xf32>
    %34 = arith.addf %27, %33 : vector<48x1xf32>
    %35 = tpu.iota {dimensions = array<i32: 1>} : vector<48x5xi32>
    %36 = vector.broadcast %6 : vector<48x1xi32> to vector<48x5xi32>
    %37 = arith.cmpi eq, %35, %36 : vector<48x5xi32>
    %cst_8 = arith.constant 0.000000e+00 : f32
    %38 = vector.broadcast %cst_8 : f32 to vector<48x5xf32>
    %39 = arith.select %37, %7, %38 : vector<48x5xi1>, vector<48x5xf32>
    %cst_9 = arith.constant dense<0.000000e+00> : vector<48xf32>
    %40 = vector.multi_reduction <add>, %39, %cst_9 [1] : vector<48x5xf32> to vector<48xf32>
    %41 = vector.shape_cast %40 : vector<48xf32> to vector<48x1xf32>
    %42 = arith.subf %34, %41 : vector<48x1xf32>
    %43 = vector.shape_cast %42 : vector<48x1xf32> to vector<1x48x1xf32>
    %cst_10 = arith.constant dense<0.000000e+00> : vector<1xf32>
    %44 = vector.multi_reduction <add>, %43, %cst_10 [1, 2] : vector<1x48x1xf32> to vector<1xf32>
    %45 = vector.shape_cast %44 : vector<1xf32> to vector<1x1x1xf32>
    %46 = vector.extract %45[0, 0, 0] : f32 from vector<1x1x1xf32>
    %cst_11 = arith.constant 0.000000e+00 : f32
    %47 = arith.addf %cst_11, %46 : f32
    %48 = arith.truncf %8 : vector<48x8xf32> to vector<48x8xbf16>
    %c0_12 = arith.constant 0 : index
    %c0_13 = arith.constant 0 : index
    %c0_14 = arith.constant 0 : index
    %49 = vector.load %arg2[%c0_12, %c0_13, %c0_14] : memref<1x8x256xbf16, #tpu.memory_space<vmem>>, vector<1x8x256xbf16>
    %50 = vector.shape_cast %49 : vector<1x8x256xbf16> to vector<8x256xbf16>
    %cst_15 = arith.constant dense<0.000000e+00> : vector<48x256xf32>
    %51 = tpu.matmul %48, %50, %cst_15 {dimension_numbers = #tpu.dot_dimension_numbers<[1], [0], [0], [1], [0, 0, 1, 1], [], []>} : vector<48x8xbf16>, vector<8x256xbf16>, vector<48x256xf32> -> vector<48x256xf32>
    %c0_16 = arith.constant 0 : index
    %c0_17 = arith.constant 0 : index
    %c0_18 = arith.constant 0 : index
    %52 = vector.load %arg3[%c0_16, %c0_17, %c0_18] : memref<1x48x256xbf16, #tpu.memory_space<vmem>>, vector<1x48x256xbf16>
    %53 = vector.shape_cast %52 : vector<1x48x256xbf16> to vector<48x256xbf16>
    %54 = arith.extf %53 : vector<48x256xbf16> to vector<48x256xf32>
    %cst_19 = arith.constant 0.000000e+00 : f32
    %55 = vector.broadcast %cst_19 : f32 to vector<48x256xf32>
    %56 = arith.maximumf %51, %55 : vector<48x256xf32>
    %57 = arith.mulf %51, %54 : vector<48x256xf32>
    %58 = arith.subf %56, %57 : vector<48x256xf32>
    %59 = math.absf %51 : vector<48x256xf32>
    %cst_20 = arith.constant 0.000000e+00 : f32
    %60 = vector.broadcast %cst_20 : f32 to vector<48x256xf32>
    %61 = arith.subf %60, %59 : vector<48x256xf32>
    %62 = math.exp %61 : vector<48x256xf32>
    %63 = math.log1p %62 : vector<48x256xf32>
    %64 = arith.addf %58, %63 : vector<48x256xf32>
    %65 = vector.broadcast %4 : vector<48x1xf32> to vector<48x256xf32>
    %66 = arith.mulf %64, %65 : vector<48x256xf32>
    %67 = vector.shape_cast %66 : vector<48x256xf32> to vector<1x48x256xf32>
    %cst_21 = arith.constant dense<0.000000e+00> : vector<1xf32>
    %68 = vector.multi_reduction <add>, %67, %cst_21 [1, 2] : vector<1x48x256xf32> to vector<1xf32>
    %69 = vector.shape_cast %68 : vector<1xf32> to vector<1x1x1xf32>
    %70 = vector.extract %69[0, 0, 0] : f32 from vector<1x1x1xf32>
    %cst_22 = arith.constant 0.000000e+00 : f32
    %71 = arith.addf %cst_22, %70 : f32
    %72 = vector.shape_cast %4 : vector<48x1xf32> to vector<1x48x1xf32>
    %cst_23 = arith.constant dense<0.000000e+00> : vector<1xf32>
    %73 = vector.multi_reduction <add>, %72, %cst_23 [1, 2] : vector<1x48x1xf32> to vector<1xf32>
    %74 = vector.shape_cast %73 : vector<1xf32> to vector<1x1x1xf32>
    %75 = vector.extract %74[0, 0, 0] : f32 from vector<1x1x1xf32>
    %cst_24 = arith.constant 0.000000e+00 : f32
    %76 = arith.addf %cst_24, %75 : f32
    %77 = tpu.iota {dimensions = array<i32: 1>} : vector<1x128xi32>
    %c0_i32 = arith.constant 0 : i32
    %78 = vector.broadcast %c0_i32 : i32 to vector<1x128xi32>
    %79 = arith.cmpi eq, %77, %78 : vector<1x128xi32>
    %cst_25 = arith.constant 0.000000e+00 : f32
    %80 = vector.broadcast %25 : f32 to vector<1x128xf32>
    %81 = vector.broadcast %cst_25 : f32 to vector<1x128xf32>
    %82 = arith.select %79, %80, %81 : vector<1x128xi1>, vector<1x128xf32>
    %c1_i32 = arith.constant 1 : i32
    %83 = vector.broadcast %c1_i32 : i32 to vector<1x128xi32>
    %84 = arith.cmpi eq, %77, %83 : vector<1x128xi32>
    %cst_26 = arith.constant 0.000000e+00 : f32
    %85 = vector.broadcast %47 : f32 to vector<1x128xf32>
    %86 = vector.broadcast %cst_26 : f32 to vector<1x128xf32>
    %87 = arith.select %84, %85, %86 : vector<1x128xi1>, vector<1x128xf32>
    %88 = arith.addf %82, %87 : vector<1x128xf32>
    %c2_i32 = arith.constant 2 : i32
    %89 = vector.broadcast %c2_i32 : i32 to vector<1x128xi32>
    %90 = arith.cmpi eq, %77, %89 : vector<1x128xi32>
    %cst_27 = arith.constant 0.000000e+00 : f32
    %91 = vector.broadcast %71 : f32 to vector<1x128xf32>
    %92 = vector.broadcast %cst_27 : f32 to vector<1x128xf32>
    %93 = arith.select %90, %91, %92 : vector<1x128xi1>, vector<1x128xf32>
    %94 = arith.addf %88, %93 : vector<1x128xf32>
    %c3_i32 = arith.constant 3 : i32
    %95 = vector.broadcast %c3_i32 : i32 to vector<1x128xi32>
    %96 = arith.cmpi eq, %77, %95 : vector<1x128xi32>
    %cst_28 = arith.constant 0.000000e+00 : f32
    %97 = vector.broadcast %76 : f32 to vector<1x128xf32>
    %98 = vector.broadcast %cst_28 : f32 to vector<1x128xf32>
    %99 = arith.select %96, %97, %98 : vector<1x128xi1>, vector<1x128xf32>
    %100 = arith.addf %94, %99 : vector<1x128xf32>
    %c0_29 = arith.constant 0 : index
    %c0_30 = arith.constant 0 : index
    %c0_31 = arith.constant 0 : index
    %101 = vector.load %arg4[%c0_29, %c0_30, %c0_31] : memref<1x1x128xf32, #tpu.memory_space<vmem>>, vector<1x1x128xf32>
    %102 = vector.shape_cast %101 : vector<1x1x128xf32> to vector<1x128xf32>
    %103 = vector.shape_cast %100 : vector<1x128xf32> to vector<1x1x128xf32>
    tpu.vector_store %arg4[%c0_29, %c0_30, %c0_31], %103 {strides = array<i32>} : memref<1x1x128xf32, #tpu.memory_space<vmem>>, vector<1x1x128xf32>,
    return
  }
  func.func @transform_0(%arg0: i32) -> (i32, i32, i32) {
    %c0_i32 = arith.constant 0 : i32
    %c0_i32_0 = arith.constant 0 : i32
    %c0_i32_1 = arith.constant 0 : i32
    return %arg0, %c0_i32, %c0_i32_0 : i32, i32, i32
  }
  func.func @transform_1(%arg0: i32) -> (i32, i32, i32) {
    %c0_i32 = arith.constant 0 : i32
    %c0_i32_0 = arith.constant 0 : i32
    %c0_i32_1 = arith.constant 0 : i32
    return %arg0, %c0_i32, %c0_i32_0 : i32, i32, i32
  }
  func.func @transform_2(%arg0: i32) -> (i32, i32, i32) {
    %c0_i32 = arith.constant 0 : i32
    %c0_i32_0 = arith.constant 0 : i32
    %c0_i32_1 = arith.constant 0 : i32
    return %arg0, %c0_i32, %c0_i32_0 : i32, i32, i32
  }
  func.func @transform_3(%arg0: i32) -> (i32, i32, i32) {
    %c0_i32 = arith.constant 0 : i32
    %c0_i32_0 = arith.constant 0 : i32
    %c0_i32_1 = arith.constant 0 : i32
    return %arg0, %c0_i32, %c0_i32_0 : i32, i32, i32
  }
}

</mosaic_0001>

<llo_original>
// kernel: netloss_forward.2
$region0: #{netloss_forward.2}
  #allocation0 [shape = 'u32[]', space=smem, size = 0x4, offset = 0x4, fixed_abs, tag = 'smem constant byte address 0x4 - core index']
  #allocation1 [shape = 'u32[144,128]{1,0:T(1,128)}', space=vmem, size = 0x12000, scoped, tag = 'internal scratch']
  %s0 = inlined_call_operand.vmem [shape: bf16[2,32,256], index: 0, kind: input, shape index: {}]
  %s1 = inlined_call_operand.vmem [shape: bf16[2,16,32], index: 1, kind: input, shape index: {}]
  %s2 = inlined_call_operand.vmem [shape: bf16[32,32], index: 2, kind: input, shape index: {}]
  %s3 = inlined_call_operand.vmem [shape: bf16[32,32], index: 3, kind: input, shape index: {}]
  %s4 = inlined_call_operand.vmem [shape: f32[32,1], index: 4, kind: input, shape index: {}]
  %s5 = inlined_call_operand.vmem [shape: f32[1,32], index: 5, kind: input, shape index: {}]
  %s6 = inlined_call_operand.vmem [shape: bf16[8,32], index: 6, kind: input, shape index: {}]
  %s7 = inlined_call_operand.vmem [shape: f32[8,1], index: 7, kind: input, shape index: {}]
  %s8 = inlined_call_operand.vmem [shape: bf16[32,384], index: 8, kind: input, shape index: {}]
  %s9 = inlined_call_operand.vmem [shape: f32[1,384], index: 9, kind: input, shape index: {}]
  %s10 = inlined_call_operand.vmem [shape: bf16[2,8,256], index: 10, kind: output, shape index: {0}]
  %s11 = inlined_call_operand.vmem [shape: f32[2,16,384], index: 11, kind: output, shape index: {1}]
  %12 = xla_tuple %s10, %s11
  %s13 = sld [smem:[#allocation0]]
  $region81: #{netloss_forward.2} parent=0
    _
  %s15 = ssub.s32 1, %s13
  %s16 = scalar_select 0, %s15, %s13
  loop: start=0, step=1, limit=4
  $region2: #{netloss_forward.2} parent=0 // loop_pre_header
    _
  $region3: #{netloss_forward.2} parent=0 // loop_header
    %s18 = sphi 0, %s22
    %p19 = scmp.ge.s32.totalorder %s18, 4
    %s28 = sphi 0, %s30
    %s31 = sphi 0, %s28
    %s32 = sphi 0, %s31
    %s48 = sphi 0, %s32
    %s54 = sphi 0, %s56
    %s57 = sphi 0, %s54
    %s58 = sphi 0, %s57
    %s74 = sphi 0, %s58
    %s78 = sphi 0, %s78
    %s80 = sphi 0, %s78
    %s81 = sphi 0, %s80
    %s95 = sphi 0, %s81
    %s99 = sphi 0, %s99
    %s101 = sphi 0, %s99
    %s102 = sphi 0, %s101
    %s116 = sphi 0, %s102
    %s120 = sphi 0, %s120
    %s122 = sphi 0, %s120
    %s123 = sphi 0, %s122
    %s137 = sphi 0, %s123
    %s141 = sphi 0, %s141
    %s143 = sphi 0, %s141
    %s144 = sphi 0, %s143
    %s158 = sphi 0, %s144
    %s162 = sphi 0, %s162
    %s164 = sphi 0, %s162
    %s165 = sphi 0, %s164
    %s179 = sphi 0, %s165
    %s183 = sphi 0, %s183
    %s185 = sphi 0, %s183
    %s186 = sphi 0, %s185
    %s200 = sphi 0, %s186
    %s204 = sphi 0, %s204
    %s206 = sphi 0, %s204
    %s207 = sphi 0, %s206
    %s221 = sphi 0, %s207
    %s225 = sphi 0, %s225
    %s227 = sphi 0, %s225
    %s228 = sphi 0, %s227
    %s242 = sphi 0, %s228
    %s248 = sphi 0, %s250
    %s251 = sphi 0, %s248
    %s252 = sphi 0, %s251
    %s268 = sphi 0, %s252
    %s274 = sphi 0, %s276
    %s277 = sphi 0, %s274
    %s278 = sphi 0, %s277
    %s294 = sphi 0, %s278
  $region4: #{netloss_forward.2} parent=0 // loop_header_branch
    %21 = sbr.rel (%p19) target = $region8
  $region5: #{netloss_forward.2} parent=0 // loop_body
    %s23 = ssub.s32 %s18, 1
    %s24 = ssub.s32 %s18, 2
    %s25 = sadd.s32 %s18, 1
    %s26 = ssub.s32 %s18, %s25
    %p27 = scmp.eq.s32.totalorder %s26, 0
    %s29 = sadd.s32 %s28, 1
    %s30 = scalar_select %p27, %s28, %s29
    %p33 = pneg %p27
    %p34 = scmp.eq.s32.totalorder %s18, 1
    %p35 = por %p33, %p34
    %p36 = scmp.ne.s32.totalorder %s28, %s31
    %p37 = scmp.eq.s32.totalorder %s18, 0
    %p38 = por %p36, %p37
    %p39 = scmp.ne.s32.totalorder %s28, %s31
    %p40 = scmp.eq.s32.totalorder %s23, 1
    %p41 = por %p39, %p40
    %p42 = scmp.ne.s32.totalorder %s31, %s32
    %p43 = scmp.eq.s32.totalorder %s23, 0
    %p44 = por %p42, %p43
    %p45 = scmp.ne.s32.totalorder %s31, %s32
    %p46 = scmp.eq.s32.totalorder %s24, 1
    %p47 = por %p45, %p46
    %p49 = scmp.ne.s32.totalorder %s32, %s48
    %p50 = scmp.eq.s32.totalorder %s24, 0
    %p51 = por %p49, %p50
    %s52 = ssub.s32 %s18, %s25
    %p53 = scmp.eq.s32.totalorder %s52, 0
    %s55 = sadd.s32 %s54, 1
    %s56 = scalar_select %p53, %s54, %s55
    %p59 = pneg %p53
    %p60 = scmp.eq.s32.totalorder %s18, 1
    %p61 = por %p59, %p60
    %p62 = scmp.ne.s32.totalorder %s54, %s57
    %p63 = scmp.eq.s32.totalorder %s18, 0
    %p64 = por %p62, %p63
    %p65 = scmp.ne.s32.totalorder %s54, %s57
    %p66 = scmp.eq.s32.totalorder %s23, 1
    %p67 = por %p65, %p66
    %p68 = scmp.ne.s32.totalorder %s57, %s58
    %p69 = scmp.eq.s32.totalorder %s23, 0
    %p70 = por %p68, %p69
    %p71 = scmp.ne.s32.totalorder %s57, %s58
    %p72 = scmp.eq.s32.totalorder %s24, 1
    %p73 = por %p71, %p72
    %p75 = scmp.ne.s32.totalorder %s58, %s74
    %p76 = scmp.eq.s32.totalorder %s24, 0
    %p77 = por %p75, %p76
    %s79 = sadd.s32 %s78, 1
    %p82 = scmp.eq.s32.totalorder %s18, 1
    %p83 = scmp.ne.s32.totalorder %s78, %s80
    %p84 = scmp.eq.s32.totalorder %s18, 0
    %p85 = por %p83, %p84
    %p86 = scmp.ne.s32.totalorder %s78, %s80
    %p87 = scmp.eq.s32.totalorder %s23, 1
    %p88 = por %p86, %p87
    %p89 = scmp.ne.s32.totalorder %s80, %s81
    %p90 = scmp.eq.s32.totalorder %s23, 0
    %p91 = por %p89, %p90
    %p92 = scmp.ne.s32.totalorder %s80, %s81
    %p93 = scmp.eq.s32.totalorder %s24, 1
    %p94 = por %p92, %p93
    %p96 = scmp.ne.s32.totalorder %s81, %s95
    %p97 = scmp.eq.s32.totalorder %s24, 0
    %p98 = por %p96, %p97
    %s100 = sadd.s32 %s99, 1
    %p103 = scmp.eq.s32.totalorder %s18, 1
    %p104 = scmp.ne.s32.totalorder %s99, %s101
    %p105 = scmp.eq.s32.totalorder %s18, 0
    %p106 = por %p104, %p105
    %p107 = scmp.ne.s32.totalorder %s99, %s101
    %p108 = scmp.eq.s32.totalorder %s23, 1
    %p109 = por %p107, %p108
    %p110 = scmp.ne.s32.totalorder %s101, %s102
    %p111 = scmp.eq.s32.totalorder %s23, 0
    %p112 = por %p110, %p111
    %p113 = scmp.ne.s32.totalorder %s101, %s102
    %p114 = scmp.eq.s32.totalorder %s24, 1
    %p115 = por %p113, %p114
    %p117 = scmp.ne.s32.totalorder %s102, %s116
    %p118 = scmp.eq.s32.totalorder %s24, 0
    %p119 = por %p117, %p118
    %s121 = sadd.s32 %s120, 1
    %p124 = scmp.eq.s32.totalorder %s18, 1
    %p125 = scmp.ne.s32.totalorder %s120, %s122
    %p126 = scmp.eq.s32.totalorder %s18, 0
    %p127 = por %p125, %p126
    %p128 = scmp.ne.s32.totalorder %s120, %s122
    %p129 = scmp.eq.s32.totalorder %s23, 1
    %p130 = por %p128, %p129
    %p131 = scmp.ne.s32.totalorder %s122, %s123
    %p132 = scmp.eq.s32.totalorder %s23, 0
    %p133 = por %p131, %p132
    %p134 = scmp.ne.s32.totalorder %s122, %s123
    %p135 = scmp.eq.s32.totalorder %s24, 1
    %p136 = por %p134, %p135
    %p138 = scmp.ne.s32.totalorder %s123, %s137
    %p139 = scmp.eq.s32.totalorder %s24, 0
    %p140 = por %p138, %p139
    %s142 = sadd.s32 %s141, 1
    %p145 = scmp.eq.s32.totalorder %s18, 1
    %p146 = scmp.ne.s32.totalorder %s141, %s143
    %p147 = scmp.eq.s32.totalorder %s18, 0
    %p148 = por %p146, %p147
    %p149 = scmp.ne.s32.totalorder %s141, %s143
    %p150 = scmp.eq.s32.totalorder %s23, 1
    %p151 = por %p149, %p150
    %p152 = scmp.ne.s32.totalorder %s143, %s144
    %p153 = scmp.eq.s32.totalorder %s23, 0
    %p154 = por %p152, %p153
    %p155 = scmp.ne.s32.totalorder %s143, %s144
    %p156 = scmp.eq.s32.totalorder %s24, 1
    %p157 = por %p155, %p156
    %p159 = scmp.ne.s32.totalorder %s144, %s158
    %p160 = scmp.eq.s32.totalorder %s24, 0
    %p161 = por %p159, %p160
    %s163 = sadd.s32 %s162, 1
    %p166 = scmp.eq.s32.totalorder %s18, 1
    %p167 = scmp.ne.s32.totalorder %s162, %s164
    %p168 = scmp.eq.s32.totalorder %s18, 0
    %p169 = por %p167, %p168
    %p170 = scmp.ne.s32.totalorder %s162, %s164
    %p171 = scmp.eq.s32.totalorder %s23, 1
    %p172 = por %p170, %p171
    %p173 = scmp.ne.s32.totalorder %s164, %s165
    %p174 = scmp.eq.s32.totalorder %s23, 0
    %p175 = por %p173, %p174
    %p176 = scmp.ne.s32.totalorder %s164, %s165
    %p177 = scmp.eq.s32.totalorder %s24, 1
    %p178 = por %p176, %p177
    %p180 = scmp.ne.s32.totalorder %s165, %s179
    %p181 = scmp.eq.s32.totalorder %s24, 0
    %p182 = por %p180, %p181
    %s184 = sadd.s32 %s183, 1
    %p187 = scmp.eq.s32.totalorder %s18, 1
    %p188 = scmp.ne.s32.totalorder %s183, %s185
    %p189 = scmp.eq.s32.totalorder %s18, 0
    %p190 = por %p188, %p189
    %p191 = scmp.ne.s32.totalorder %s183, %s185
    %p192 = scmp.eq.s32.totalorder %s23, 1
    %p193 = por %p191, %p192
    %p194 = scmp.ne.s32.totalorder %s185, %s186
    %p195 = scmp.eq.s32.totalorder %s23, 0
    %p196 = por %p194, %p195
    %p197 = scmp.ne.s32.totalorder %s185, %s186
    %p198 = scmp.eq.s32.totalorder %s24, 1
    %p199 = por %p197, %p198
    %p201 = scmp.ne.s32.totalorder %s186, %s200
    %p202 = scmp.eq.s32.totalorder %s24, 0
    %p203 = por %p201, %p202
    %s205 = sadd.s32 %s204, 1
    %p208 = scmp.eq.s32.totalorder %s18, 1
    %p209 = scmp.ne.s32.totalorder %s204, %s206
    %p210 = scmp.eq.s32.totalorder %s18, 0
    %p211 = por %p209, %p210
    %p212 = scmp.ne.s32.totalorder %s204, %s206
    %p213 = scmp.eq.s32.totalorder %s23, 1
    %p214 = por %p212, %p213
    %p215 = scmp.ne.s32.totalorder %s206, %s207
    %p216 = scmp.eq.s32.totalorder %s23, 0
    %p217 = por %p215, %p216
    %p218 = scmp.ne.s32.totalorder %s206, %s207
    %p219 = scmp.eq.s32.totalorder %s24, 1
    %p220 = por %p218, %p219
    %p222 = scmp.ne.s32.totalorder %s207, %s221
    %p223 = scmp.eq.s32.totalorder %s24, 0
    %p224 = por %p222, %p223
    %s226 = sadd.s32 %s225, 1
    %p229 = scmp.eq.s32.totalorder %s18, 1
    %p230 = scmp.ne.s32.totalorder %s225, %s227
    %p231 = scmp.eq.s32.totalorder %s18, 0
    %p232 = por %p230, %p231
    %p233 = scmp.ne.s32.totalorder %s225, %s227
    %p234 = scmp.eq.s32.totalorder %s23, 1
    %p235 = por %p233, %p234
    %p236 = scmp.ne.s32.totalorder %s227, %s228
    %p237 = scmp.eq.s32.totalorder %s23, 0
    %p238 = por %p236, %p237
    %p239 = scmp.ne.s32.totalorder %s227, %s228
    %p240 = scmp.eq.s32.totalorder %s24, 1
    %p241 = por %p239, %p240
    %p243 = scmp.ne.s32.totalorder %s228, %s242
    %p244 = scmp.eq.s32.totalorder %s24, 0
    %p245 = por %p243, %p244
    %s246 = ssub.s32 %s18, %s25
    %p247 = scmp.eq.s32.totalorder %s246, 0
    %s249 = sadd.s32 %s248, 1
    %s250 = scalar_select %p247, %s248, %s249
    %p253 = pneg %p247
    %p254 = scmp.eq.s32.totalorder %s18, 1
    %p255 = por %p253, %p254
    %p256 = scmp.ne.s32.totalorder %s248, %s251
    %p257 = scmp.eq.s32.totalorder %s18, 0
    %p258 = por %p256, %p257
    %p259 = scmp.ne.s32.totalorder %s248, %s251
    %p260 = scmp.eq.s32.totalorder %s23, 1
    %p261 = por %p259, %p260
    %p262 = scmp.ne.s32.totalorder %s251, %s252
    %p263 = scmp.eq.s32.totalorder %s23, 0
    %p264 = por %p262, %p263
    %p265 = scmp.ne.s32.totalorder %s251, %s252
    %p266 = scmp.eq.s32.totalorder %s24, 1
    %p267 = por %p265, %p266
    %p269 = scmp.ne.s32.totalorder %s252, %s268
    %p270 = scmp.eq.s32.totalorder %s24, 0
    %p271 = por %p269, %p270
    %s272 = ssub.s32 %s18, %s25
    %p273 = scmp.eq.s32.totalorder %s272, 0
    %s275 = sadd.s32 %s274, 1
    %s276 = scalar_select %p273, %s274, %s275
    %p279 = pneg %p273
    %p280 = scmp.eq.s32.totalorder %s18, 1
    %p281 = por %p279, %p280
    %p282 = scmp.ne.s32.totalorder %s274, %s277
    %p283 = scmp.eq.s32.totalorder %s18, 0
    %p284 = por %p282, %p283
    %p285 = scmp.ne.s32.totalorder %s274, %s277
    %p286 = scmp.eq.s32.totalorder %s23, 1
    %p287 = por %p285, %p286
    %p288 = scmp.ne.s32.totalorder %s277, %s278
    %p289 = scmp.eq.s32.totalorder %s23, 0
    %p290 = por %p288, %p289
    %p291 = scmp.ne.s32.totalorder %s277, %s278
    %p292 = scmp.eq.s32.totalorder %s24, 1
    %p293 = por %p291, %p292
    %p295 = scmp.ne.s32.totalorder %s278, %s294
    %p296 = scmp.eq.s32.totalorder %s24, 0
    %p297 = por %p295, %p296
    %p298 = scmp.le.s32.totalorder 1, %s18
    %p299 = scmp.lt.s32.totalorder %s18, 3
    %p300 = pnand %p298, %p299
    %p301 = pneg %p300
    // Predicated region
    $region9: #{netloss_forward.2} parent=5 // pred_check
      _
    $region10: #{netloss_forward.2} parent=5 // pred_check_branch
      %303 = sbr.rel (%p300) target = $region12
    $region11: #{netloss_forward.2} parent=5 // pred_region
      %s304 = ssub.s32 %s18, 1
      // Predicated region
      $region13: #{netloss_forward.2} parent=11 // pred_check
        %p305 = pneg %p91
      $region14: #{netloss_forward.2} parent=11 // pred_check_branch
        %307 = sbr.rel (%p305) target = $region16
      $region15: #{netloss_forward.2} parent=11 // pred_region
        _
      $region16: #{netloss_forward.2} parent=11 // pred_fallthru
        _
      // Predicated region
      $region17: #{netloss_forward.2} parent=11 // pred_check
        %p308 = pneg %p112
      $region18: #{netloss_forward.2} parent=11 // pred_check_branch
        %310 = sbr.rel (%p308) target = $region20
      $region19: #{netloss_forward.2} parent=11 // pred_region
        _
      $region20: #{netloss_forward.2} parent=11 // pred_fallthru
        _
      // Predicated region
      $region21: #{netloss_forward.2} parent=11 // pred_check
        %p311 = pneg %p133
      $region22: #{netloss_forward.2} parent=11 // pred_check_branch
        %313 = sbr.rel (%p311) target = $region24
      $region23: #{netloss_forward.2} parent=11 // pred_region
        _
      $region24: #{netloss_forward.2} parent=11 // pred_fallthru
        _
      // Predicated region
      $region25: #{netloss_forward.2} parent=11 // pred_check
        %p314 = pneg %p154
      $region26: #{netloss_forward.2} parent=11 // pred_check_branch
        %316 = sbr.rel (%p314) target = $region28
      $region27: #{netloss_forward.2} parent=11 // pred_region
        _
      $region28: #{netloss_forward.2} parent=11 // pred_fallthru
        _
      // Predicated region
      $region29: #{netloss_forward.2} parent=11 // pred_check
        %p317 = pneg %p175
      $region30: #{netloss_forward.2} parent=11 // pred_check_branch
        %319 = sbr.rel (%p317) target = $region32
      $region31: #{netloss_forward.2} parent=11 // pred_region
        _
      $region32: #{netloss_forward.2} parent=11 // pred_fallthru
        _
      // Predicated region
      $region33: #{netloss_forward.2} parent=11 // pred_check
        %p320 = pneg %p196
      $region34: #{netloss_forward.2} parent=11 // pred_check_branch
        %322 = sbr.rel (%p320) target = $region36
      $region35: #{netloss_forward.2} parent=11 // pred_region
        _
      $region36: #{netloss_forward.2} parent=11 // pred_fallthru
        _
      // Predicated region
      $region37: #{netloss_forward.2} parent=11 // pred_check
        %p323 = pneg %p217
      $region38: #{netloss_forward.2} parent=11 // pred_check_branch
        %325 = sbr.rel (%p323) target = $region40
      $region39: #{netloss_forward.2} parent=11 // pred_region
        _
      $region40: #{netloss_forward.2} parent=11 // pred_fallthru
        _
      // Predicated region
      $region41: #{netloss_forward.2} parent=11 // pred_check
        %p326 = pneg %p238
      $region42: #{netloss_forward.2} parent=11 // pred_check_branch
        %328 = sbr.rel (%p326) target = $region44
      $region43: #{netloss_forward.2} parent=11 // pred_region
        _
      $region44: #{netloss_forward.2} parent=11 // pred_fallthru
        _
    $region12: #{netloss_forward.2} parent=5 // pred_fallthru
      _
    %p329 = scmp.lt.s32.totalorder %s18, 2
    // Predicated region
    $region45: #{netloss_forward.2} parent=5 // pred_check
      %p330 = pneg %p329
    $region46: #{netloss_forward.2} parent=5 // pred_check_branch
      %332 = sbr.rel (%p330) target = $region48
    $region47: #{netloss_forward.2} parent=5 // pred_region
      // Predicated region
      $region49: #{netloss_forward.2} parent=47 // pred_check
        %p333 = pneg %p38
      $region50: #{netloss_forward.2} parent=47 // pred_check_branch
        %335 = sbr.rel (%p333) target = $region52
      $region51: #{netloss_forward.2} parent=47 // pred_region
        %p336 = scmp.lt.s32.totalorder %s18, 1
        %s337 = scalar_select %p336, %s18, 1
        %s338 = smul.addr %s337, 8
        %s339 = smul.addr %s338, 4
        %s340 = scalar_lea.vmem %s0, %s339
      $region52: #{netloss_forward.2} parent=47 // pred_fallthru
        _
      // Predicated region
      $region53: #{netloss_forward.2} parent=47 // pred_check
        %p341 = pneg %p64
      $region54: #{netloss_forward.2} parent=47 // pred_check_branch
        %343 = sbr.rel (%p341) target = $region56
      $region55: #{netloss_forward.2} parent=47 // pred_region
        %p344 = scmp.lt.s32.totalorder %s18, 1
        %s345 = scalar_select %p344, %s18, 1
        %s346 = smul.addr %s345, 2
        %s347 = smul.addr %s346, 4
        %s348 = scalar_lea.vmem %s1, %s347
      $region56: #{netloss_forward.2} parent=47 // pred_fallthru
        _
    $region48: #{netloss_forward.2} parent=5 // pred_fallthru
      _
    %p349 = scmp.le.s32.totalorder 1, %s18
    %p350 = scmp.lt.s32.totalorder %s18, 3
    %p351 = pnand %p349, %p350
    %p352 = pneg %p351
    // Predicated region
    $region57: #{netloss_forward.2} parent=5 // pred_check
      _
    $region58: #{netloss_forward.2} parent=5 // pred_check_branch
      %354 = sbr.rel (%p351) target = $region60
    $region59: #{netloss_forward.2} parent=5 // pred_region
      %s355 = ssub.s32 %s18, 1
      %p356 = scmp.lt.s32.totalorder %s23, 1
      %s357 = scalar_select %p356, %s23, 1
      %s358 = smul.addr %s357, 8
      %s359 = smul.addr %s358, 4
      %s360 = scalar_lea.vmem %s0, %s359
      %p361 = pneg %p44
      %p362 = pneg %p41
      %p363 = scmp.lt.s32.totalorder %s23, 1
      %s364 = scalar_select %p363, %s23, 1
      %s365 = smul.addr %s364, 2
      %s366 = smul.addr %s365, 4
      %s367 = scalar_lea.vmem %s1, %s366
      %p368 = pneg %p70
      %p369 = pneg %p67
      %p370 = pneg %p91
      %p371 = pneg %p88
      %p372 = pneg %p112
      %p373 = pneg %p109
      %p374 = pneg %p133
      %p375 = pneg %p130
      %p376 = pneg %p154
      %p377 = pneg %p151
      %p378 = pneg %p175
      %p379 = pneg %p172
      %p380 = pneg %p196
      %p381 = pneg %p193
      %p382 = pneg %p217
      %p383 = pneg %p214
      %p384 = pneg %p238
      %p385 = pneg %p235
      %p386 = pneg %p264
      %p387 = pneg %p261
      %p388 = scmp.lt.s32.totalorder %s23, 1
      %s389 = scalar_select %p388, %s23, 1
      %s390 = smul.addr %s389, 2
      %s391 = smul.addr %s390, 4
      %s392 = scalar_lea.vmem %s10, %s391
      %p393 = pneg %p290
      %p394 = pneg %p287
      %p395 = scmp.lt.s32.totalorder %s23, 1
      %s396 = scalar_select %p395, %s23, 1
      %s397 = smul.addr %s396, 6
      %s398 = smul.addr %s397, 8
      %s399 = scalar_lea.vmem %s11, %s398
      %p400 = scmp.lt.s32.totalorder %s23, 1
      %s401 = scalar_select %p400, %s23, 1
      %s402 = smul.addr %s401, 8
      %s403 = smul.addr %s402, 4
      %s404 = scalar_lea.vmem %s0, %s403
      %p405 = scmp.lt.s32.totalorder %s23, 1
      %s406 = scalar_select %p405, %s23, 1
      %s407 = smul.addr %s406, 2
      %s408 = smul.addr %s407, 4
      %s409 = scalar_lea.vmem %s1, %s408
      %p410 = scmp.lt.s32.totalorder %s23, 1
      %s411 = scalar_select %p410, %s23, 1
      %s412 = smul.addr %s411, 2
      %s413 = smul.addr %s412, 4
      %s414 = scalar_lea.vmem %s10, %s413
      %p415 = scmp.lt.s32.totalorder %s23, 1
      %s416 = scalar_select %p415, %s23, 1
      %s417 = smul.addr %s416, 6
      %s418 = smul.addr %s417, 8
      %s419 = scalar_lea.vmem %s11, %s418
      %v421 = vld [vmem:[%s2] sm:$0xf]
      %v422 = vld [vmem:[%s2 + $0x4] sm:$0xf]
      %v423 = vld [vmem:[%s2 + $0x8] sm:$0xf]
      %v424 = vld [vmem:[%s2 + $0xc] sm:$0xf]
      %v425 = vld [vmem:[%s3] sm:$0xf]
      %v426 = vld [vmem:[%s3 + $0x4] sm:$0xf]
      %v427 = vld [vmem:[%s3 + $0x8] sm:$0xf]
      %v428 = vld [vmem:[%s3 + $0xc] sm:$0xf]
      %v429 = vld [vmem:[%s6] sm:$0xf]
      %v430 = vld [vmem:[%s8] sm:$0xff]
      %v431 = vld [vmem:[%s8 + $0x8] sm:$0xf]
      %v432 = vld [vmem:[%s8 + $0xc] sm:$0xff]
      %v433 = vld [vmem:[%s8 + $0x14] sm:$0xf]
      %v434 = vld [vmem:[%s8 + $0x18] sm:$0xff]
      %v435 = vld [vmem:[%s8 + $0x20] sm:$0xf]
      %v436 = vld [vmem:[%s8 + $0x24] sm:$0xff]
      %v437 = vld [vmem:[%s8 + $0x2c] sm:$0xf]
      %v438 = vlaneseq
      %v439 = vand.u32 %v438, 127
      %v440 = vadd.s32 %v439, 128
      %v441 = vadd.s32 %v439, 256
      %v442 = vand.u32 %v439, 127
      %v443 = vand.u32 %v440, 127
      %v444 = vand.u32 %v441, 127
      %vm445 = vcmp.ge.s32.totalorder %v442, 16
      %vm446 = vcmp.ge.s32.totalorder %v443, 16
      %vm447 = vcmp.ge.s32.totalorder %v444, 16
      %vm448 = vcmp.lt.s32.totalorder %v442, 24
      %vm449 = vcmp.lt.s32.totalorder %v443, 24
      %vm450 = vcmp.lt.s32.totalorder %v444, 24
      %vm451 = vmand %vm445, %vm448
      %vm452 = vmand %vm446, %vm449
      %vm453 = vmand %vm447, %vm450
      %v454 = vld [vmem:[%s404] sm:$0xff]
      %v455 = vld [vmem:[%s404 + $0x8] sm:$0xff]
      %v456 = vld [vmem:[%s404 + $0x10] sm:$0xff]
      %v457 = vld [vmem:[%s404 + $0x18] sm:$0xff]
      %v458 = vld [vmem:[%s4] sm:$0xff]
      %v459 = vld [vmem:[%s4 + $0x8] sm:$0xff]
      %v460 = vld [vmem:[%s4 + $0x10] sm:$0xff]
      %v461 = vld [vmem:[%s4 + $0x18] sm:$0xff]
      %463 = vset.pattern.permute.xlu0 0
      %464 = vperm.xlu0 %463, %v458
      %v465 = vpop.permute.xlu0 %464
      %468 = vset.pattern.permute.xlu0 0
      %469 = vperm.xlu0 %468, %v459
      %v470 = vpop.permute.xlu0 %469
      %473 = vset.pattern.permute.xlu0 0
      %474 = vperm.xlu0 %473, %v460
      %v475 = vpop.permute.xlu0 %474
      %478 = vset.pattern.permute.xlu0 0
      %479 = vperm.xlu0 %478, %v461
      %v480 = vpop.permute.xlu0 %479
      %v486 = vunpack.c.l.b16 %v421
      %v487 = vunpack.c.l.b16 %v422
      %v488 = vunpack.c.l.b16 %v423
      %v489 = vunpack.c.l.b16 %v424
      %v490 = vpack.c.b16 %v487, %v486
      %v491 = vpack.c.b16 %v489, %v488
      %v496 = vunpack.c.l.b16 %v454
      %v497 = vunpack.c.h.b16 %v454
      %v498 = vunpack.c.l.b16 %v455
      %v499 = vunpack.c.h.b16 %v455
      %v500 = vunpack.c.l.b16 %v456
      %v501 = vunpack.c.h.b16 %v456
      %v502 = vunpack.c.l.b16 %v457
      %v503 = vunpack.c.h.b16 %v457
      %v504 = vpack.c.b16 %v498, %v496
      %v505 = vpack.c.b16 %v499, %v497
      %v506 = vpack.c.b16 %v502, %v500
      %v507 = vpack.c.b16 %v503, %v501
      %vm512 = vcmask 261120
      %v514 = vsel %vm512, %v490, 0
      %v517 = vsel %vm512, %v491, 0
      %519 = vmatprep.subr.bf16.mxu0 %v505
      %520 = vmatpush1.bf16.msra.mxu0 %v504
      %521 = vmatprep.subr.bf16.mxu0 %v507
      %522 = vmatpush1.bf16.msra.mxu0 %v506
      %523 = vmatprep.subr.bf16.mxu0 0
      %524 = vmatpush1.bf16.msra.mxu0 0
      %525 = vmatprep.subr.bf16.mxu0 0
      %526 = vmatpush1.bf16.msra.mxu0 0
      %527 = vmatprep.subr.bf16.mxu0 0
      %528 = vmatpush1.bf16.msra.mxu0 0
      %529 = vmatprep.subr.bf16.mxu0 0
      %530 = vmatpush1.bf16.msra.mxu0 0
      %531 = vmatprep.subr.bf16.mxu0 0
      %532 = vmatpush1.bf16.msra.mxu0 0
      %533 = vmatprep.subr.bf16.mxu0 0
      %534 = vmatpush1.bf16.msra.mxu0 0
      %535 = vmatprep.subr.bf16.mxu0 0
      %536 = vmatpush1.bf16.msra.mxu0 0
      %537 = vmatprep.subr.bf16.mxu0 0
      %538 = vmatpush1.bf16.msra.mxu0 0
      %539 = vmatprep.subr.bf16.mxu0 0
      %540 = vmatpush1.bf16.msra.mxu0 0
      %541 = vmatprep.subr.bf16.mxu0 0
      %542 = vmatpush1.bf16.msra.mxu0 0
      %543 = vmatprep.subr.bf16.mxu0 0
      %544 = vmatpush1.bf16.msra.mxu0 0
      %545 = vmatprep.subr.bf16.mxu0 0
      %546 = vmatpush1.bf16.msra.mxu0 0
      %547 = vmatprep.subr.bf16.mxu0 0
      %548 = vmatpush1.bf16.msra.mxu0 0
      %549 = vmatprep.subr.bf16.mxu0 0
      %550 = vmatpush1.bf16.msra.mxu0 0
      %551 = vmatprep.mubr.bf16.mxu0 0
      %552 = vmatmul.mubr.bf16.gmra.mrb[0].mxu0 %v514
      %v553 = vpop.f32.mrb[0].mxu0
      %v554 = vadd.f32 %v465, %v553
      %v555 = vpop.f32.mrb[0].mxu0
      %v556 = vadd.f32 %v465, %v555
      %v557 = vpop.f32.mrb[0].mxu0
      %v558 = vadd.f32 %v470, %v557
      %v559 = vpop.f32.mrb[0].mxu0
      %v560 = vadd.f32 %v470, %v559
      %561 = vmatprep.mubr.bf16.mxu0 0
      %562 = vmatmul.mubr.bf16.gmra.mrb[0].mxu0 %v517
      %v563 = vpop.f32.mrb[0].mxu0
      %v564 = vadd.f32 %v475, %v563
      %v565 = vpop.f32.mrb[0].mxu0
      %v566 = vadd.f32 %v475, %v565
      %v567 = vpop.f32.mrb[0].mxu0
      %v568 = vadd.f32 %v480, %v567
      %v569 = vpop.f32.mrb[0].mxu0
      %v570 = vadd.f32 %v480, %v569
      %571 = vdwg.mxu0
      %v572 = vmax.f32 %v554, 0.0
      %v573 = vmax.f32 %v556, 0.0
      %v574 = vmax.f32 %v558, 0.0
      %v575 = vmax.f32 %v560, 0.0
      %v576 = vmax.f32 %v564, 0.0
      %v577 = vmax.f32 %v566, 0.0
      %v578 = vmax.f32 %v568, 0.0
      %v579 = vmax.f32 %v570, 0.0
      %v580 = vpack.c.bf16 %v574, %v572
      %v581 = vpack.c.bf16 %v575, %v573
      %v582 = vpack.c.bf16 %v578, %v576
      %v583 = vpack.c.bf16 %v579, %v577
      %v584 = vld [vmem:[%s7] sm:$0xff]
      %586 = vset.pattern.permute.xlu0 0
      %587 = vperm.xlu0 %586, %v584
      %v588 = vpop.permute.xlu0 %587
      %v591 = vsel %vm512, %v429, 0
      %593 = vmatprep.subr.bf16.mxu0 %v581
      %594 = vmatpush1.bf16.msra.mxu0 %v580
      %595 = vmatprep.subr.bf16.mxu0 %v583
      %596 = vmatpush1.bf16.msra.mxu0 %v582
      %597 = vmatprep.subr.bf16.mxu0 0
      %598 = vmatpush1.bf16.msra.mxu0 0
      %599 = vmatprep.subr.bf16.mxu0 0
      %600 = vmatpush1.bf16.msra.mxu0 0
      %601 = vmatprep.subr.bf16.mxu0 0
      %602 = vmatpush1.bf16.msra.mxu0 0
      %603 = vmatprep.subr.bf16.mxu0 0
      %604 = vmatpush1.bf16.msra.mxu0 0
      %605 = vmatprep.subr.bf16.mxu0 0
      %606 = vmatpush1.bf16.msra.mxu0 0
      %607 = vmatprep.subr.bf16.mxu0 0
      %608 = vmatpush1.bf16.msra.mxu0 0
      %609 = vmatprep.subr.bf16.mxu0 0
      %610 = vmatpush1.bf16.msra.mxu0 0
      %611 = vmatprep.subr.bf16.mxu0 0
      %612 = vmatpush1.bf16.msra.mxu0 0
      %613 = vmatprep.subr.bf16.mxu0 0
      %614 = vmatpush1.bf16.msra.mxu0 0
      %615 = vmatprep.subr.bf16.mxu0 0
      %616 = vmatpush1.bf16.msra.mxu0 0
      %617 = vmatprep.subr.bf16.mxu0 0
      %618 = vmatpush1.bf16.msra.mxu0 0
      %619 = vmatprep.subr.bf16.mxu0 0
      %620 = vmatpush1.bf16.msra.mxu0 0
      %621 = vmatprep.subr.bf16.mxu0 0
      %622 = vmatpush1.bf16.msra.mxu0 0
      %623 = vmatprep.subr.bf16.mxu0 0
      %624 = vmatpush1.bf16.msra.mxu0 0
      %625 = vmatprep.mubr.bf16.mxu0 0
      %626 = vmatmul.mubr.bf16.gmra.mrb[0].mxu0 %v591
      %v627 = vpop.f32.mrb[0].mxu0
      %v628 = vadd.f32 %v588, %v627
      %v629 = vpop.f32.mrb[0].mxu0
      %v630 = vadd.f32 %v588, %v629
      %v631 = vpop.f32.mrb[0].mxu0
      %v632 = vpop.f32.mrb[0].mxu0
      %633 = vdwg.mxu0
      %v634 = vmax.f32 %v628, 0.0
      %v635 = vmax.f32 %v630, 0.0
      %v636 = vpack.c.bf16 %v634, %v634
      %v637 = vpack.c.bf16 %v635, %v635
      %v640 = vunpack.c.l.b16 %v636
      %v641 = vunpack.c.l.b16 %v637
      %v642 = vpack.c.b16 %v641, %v640
      %644 = vst [vmem:[%s414] sm:$0xff] %v642
      %v645 = vld [vmem:[%s409] sm:$0xf]
      %v646 = vld [vmem:[%s409 + $0x4] sm:$0xf]
      %v647 = vld [vmem:[%s5] sm:$0x1]
      %v649 = vlaneseq
      %v650 = vshrl.u32 %v649, 7
      %v651 = vsub.s32 0, %v650
      %v652 = vrot.slane %v647, %v651
      %v656 = vunpack.c.l.b16 %v645
      %v657 = vunpack.c.l.b16 %v646
      %v658 = vpack.c.b16 %v657, %v656
      %v663 = vunpack.c.l.b16 %v425
      %v664 = vunpack.c.l.b16 %v426
      %v665 = vunpack.c.l.b16 %v427
      %v666 = vunpack.c.l.b16 %v428
      %v667 = vpack.c.b16 %v664, %v663
      %v668 = vpack.c.b16 %v666, %v665
      %v672 = vsel %vm512, %v658, 0
      %674 = vmatprep.subr.bf16.mxu0 0
      %675 = vmatpush1.bf16.msra.mxu0 %v667
      %676 = vmatprep.subr.bf16.mxu0 0
      %677 = vmatpush1.bf16.msra.mxu0 %v668
      %678 = vmatprep.subr.bf16.mxu0 0
      %679 = vmatpush1.bf16.msra.mxu0 0
      %680 = vmatprep.subr.bf16.mxu0 0
      %681 = vmatpush1.bf16.msra.mxu0 0
      %682 = vmatprep.subr.bf16.mxu0 0
      %683 = vmatpush1.bf16.msra.mxu0 0
      %684 = vmatprep.subr.bf16.mxu0 0
      %685 = vmatpush1.bf16.msra.mxu0 0
      %686 = vmatprep.subr.bf16.mxu0 0
      %687 = vmatpush1.bf16.msra.mxu0 0
      %688 = vmatprep.subr.bf16.mxu0 0
      %689 = vmatpush1.bf16.msra.mxu0 0
      %690 = vmatprep.subr.bf16.mxu0 0
      %691 = vmatpush1.bf16.msra.mxu0 0
      %692 = vmatprep.subr.bf16.mxu0 0
      %693 = vmatpush1.bf16.msra.mxu0 0
      %694 = vmatprep.subr.bf16.mxu0 0
      %695 = vmatpush1.bf16.msra.mxu0 0
      %696 = vmatprep.subr.bf16.mxu0 0
      %697 = vmatpush1.bf16.msra.mxu0 0
      %698 = vmatprep.subr.bf16.mxu0 0
      %699 = vmatpush1.bf16.msra.mxu0 0
      %700 = vmatprep.subr.bf16.mxu0 0
      %701 = vmatpush1.bf16.msra.mxu0 0
      %702 = vmatprep.subr.bf16.mxu0 0
      %703 = vmatpush1.bf16.msra.mxu0 0
      %704 = vmatprep.subr.bf16.mxu0 0
      %705 = vmatpush1.bf16.msra.mxu0 0
      %706 = vmatprep.mubr.bf16.mxu0 0
      %707 = vmatmul.mubr.bf16.gmra.mrb[0].mxu0 %v672
      %v708 = vpop.f32.mrb[0].mxu0
      %v709 = vadd.f32 %v652, %v708
      %v710 = vpop.f32.mrb[0].mxu0
      %v711 = vpop.f32.mrb[0].mxu0
      %v712 = vadd.f32 %v652, %v711
      %v713 = vpop.f32.mrb[0].mxu0
      %714 = vdwg.mxu0
      %v715 = vmax.f32 %v709, 0.0
      %v716 = vmax.f32 %v712, 0.0
      %v717 = vpack.c.bf16 %v716, %v715
      %v718 = vld [vmem:[%s9] sm:$0x7]
      %v720 = vlaneseq
      %v721 = vshrl.u32 %v720, 7
      %v722 = vsub.s32 0, %v721
      %v723 = vrot.slane %v718, %v722
      %v724 = vlaneseq
      %v725 = vshrl.u32 %v724, 7
      %v726 = vsub.s32 1, %v725
      %v727 = vrot.slane %v718, %v726
      %v728 = vlaneseq
      %v729 = vshrl.u32 %v728, 7
      %v730 = vsub.s32 2, %v729
      %v731 = vrot.slane %v718, %v730
      %v743 = vunpack.c.l.b16 %v430
      %v744 = vunpack.c.h.b16 %v430
      %v745 = vunpack.c.l.b16 %v431
      %v746 = vunpack.c.l.b16 %v432
      %v747 = vunpack.c.h.b16 %v432
      %v748 = vunpack.c.l.b16 %v433
      %v749 = vunpack.c.l.b16 %v434
      %v750 = vunpack.c.h.b16 %v434
      %v751 = vunpack.c.l.b16 %v435
      %v752 = vunpack.c.l.b16 %v436
      %v753 = vunpack.c.h.b16 %v436
      %v754 = vunpack.c.l.b16 %v437
      %v755 = vpack.c.b16 %v746, %v743
      %v756 = vpack.c.b16 %v747, %v744
      %v757 = vpack.c.b16 %v748, %v745
      %v758 = vpack.c.b16 %v752, %v749
      %v759 = vpack.c.b16 %v753, %v750
      %v760 = vpack.c.b16 %v754, %v751
      %v768 = vsel %vm512, %v717, 0
      %770 = vmatprep.subr.bf16.mxu0 %v756
      %771 = vmatpush1.bf16.msra.mxu0 %v755
      %772 = vmatprep.subr.bf16.mxu0 %v759
      %773 = vmatpush1.bf16.msra.mxu0 %v758
      %774 = vmatprep.subr.bf16.mxu0 0
      %775 = vmatpush1.bf16.msra.mxu0 0
      %776 = vmatprep.subr.bf16.mxu0 0
      %777 = vmatpush1.bf16.msra.mxu0 0
      %778 = vmatprep.subr.bf16.mxu0 0
      %779 = vmatpush1.bf16.msra.mxu0 0
      %780 = vmatprep.subr.bf16.mxu0 0
      %781 = vmatpush1.bf16.msra.mxu0 0
      %782 = vmatprep.subr.bf16.mxu0 0
      %783 = vmatpush1.bf16.msra.mxu0 0
      %784 = vmatprep.subr.bf16.mxu0 0
      %785 = vmatpush1.bf16.msra.mxu0 0
      %786 = vmatprep.subr.bf16.mxu0 0
      %787 = vmatpush1.bf16.msra.mxu0 0
      %788 = vmatprep.subr.bf16.mxu0 0
      %789 = vmatpush1.bf16.msra.mxu0 0
      %790 = vmatprep.subr.bf16.mxu0 0
      %791 = vmatpush1.bf16.msra.mxu0 0
      %792 = vmatprep.subr.bf16.mxu0 0
      %793 = vmatpush1.bf16.msra.mxu0 0
      %794 = vmatprep.subr.bf16.mxu0 0
      %795 = vmatpush1.bf16.msra.mxu0 0
      %796 = vmatprep.subr.bf16.mxu0 0
      %797 = vmatpush1.bf16.msra.mxu0 0
      %798 = vmatprep.subr.bf16.mxu0 0
      %799 = vmatpush1.bf16.msra.mxu0 0
      %800 = vmatprep.subr.bf16.mxu0 0
      %801 = vmatpush1.bf16.msra.mxu0 0
      %802 = vmatprep.mubr.bf16.mxu0 0
      %803 = vmatmul.mubr.bf16.gmra.mrb[0].mxu0 %v768
      %v804 = vpop.f32.mrb[0].mxu0
      %v805 = vadd.f32 %v723, %v804
      %v806 = vpop.f32.mrb[0].mxu0
      %v807 = vadd.f32 %v727, %v806
      %v808 = vpop.f32.mrb[0].mxu0
      %v809 = vadd.f32 %v723, %v808
      %v810 = vpop.f32.mrb[0].mxu0
      %v811 = vadd.f32 %v727, %v810
      %812 = vdwg.mxu0
      %813 = vmatprep.subr.bf16.mxu0 0
      %814 = vmatpush1.bf16.msra.mxu0 %v757
      %815 = vmatprep.subr.bf16.mxu0 0
      %816 = vmatpush1.bf16.msra.mxu0 %v760
      %817 = vmatprep.subr.bf16.mxu0 0
      %818 = vmatpush1.bf16.msra.mxu0 0
      %819 = vmatprep.subr.bf16.mxu0 0
      %820 = vmatpush1.bf16.msra.mxu0 0
      %821 = vmatprep.subr.bf16.mxu0 0
      %822 = vmatpush1.bf16.msra.mxu0 0
      %823 = vmatprep.subr.bf16.mxu0 0
      %824 = vmatpush1.bf16.msra.mxu0 0
      %825 = vmatprep.subr.bf16.mxu0 0
      %826 = vmatpush1.bf16.msra.mxu0 0
      %827 = vmatprep.subr.bf16.mxu0 0
      %828 = vmatpush1.bf16.msra.mxu0 0
      %829 = vmatprep.subr.bf16.mxu0 0
      %830 = vmatpush1.bf16.msra.mxu0 0
      %831 = vmatprep.subr.bf16.mxu0 0
      %832 = vmatpush1.bf16.msra.mxu0 0
      %833 = vmatprep.subr.bf16.mxu0 0
      %834 = vmatpush1.bf16.msra.mxu0 0
      %835 = vmatprep.subr.bf16.mxu0 0
      %836 = vmatpush1.bf16.msra.mxu0 0
      %837 = vmatprep.subr.bf16.mxu0 0
      %838 = vmatpush1.bf16.msra.mxu0 0
      %839 = vmatprep.subr.bf16.mxu0 0
      %840 = vmatpush1.bf16.msra.mxu0 0
      %841 = vmatprep.subr.bf16.mxu0 0
      %842 = vmatpush1.bf16.msra.mxu0 0
      %843 = vmatprep.subr.bf16.mxu0 0
      %844 = vmatpush1.bf16.msra.mxu0 0
      %845 = vmatprep.mubr.bf16.mxu0 0
      %846 = vmatmul.mubr.bf16.gmra.mrb[0].mxu0 %v768
      %v847 = vpop.f32.mrb[0].mxu0
      %v848 = vadd.f32 %v731, %v847
      %v849 = vpop.f32.mrb[0].mxu0
      %v850 = vpop.f32.mrb[0].mxu0
      %v851 = vadd.f32 %v731, %v850
      %v852 = vpop.f32.mrb[0].mxu0
      %853 = vdwg.mxu0
      %v854 = vtanh.pop %v805
      %v855 = vtanh.pop %v807
      %v856 = vtanh.pop %v848
      %v857 = vtanh.pop %v809
      %v858 = vtanh.pop %v811
      %v859 = vtanh.pop %v851
      %v860 = vsel %vm451, %v854, %v805
      %v861 = vsel %vm452, %v855, %v807
      %v862 = vsel %vm453, %v856, %v848
      %v863 = vsel %vm451, %v857, %v809
      %v864 = vsel %vm452, %v858, %v811
      %v865 = vsel %vm453, %v859, %v851
      %866 = vst [vmem:[%s419] sm:$0xff] %v860
      %867 = vst [vmem:[%s419 + $0x8] sm:$0xff] %v861
      %868 = vst [vmem:[%s419 + $0x10] sm:$0xff] %v862
      %869 = vst [vmem:[%s419 + $0x18] sm:$0xff] %v863
      %870 = vst [vmem:[%s419 + $0x20] sm:$0xff] %v864
      %871 = vst [vmem:[%s419 + $0x28] sm:$0xff] %v865
      %p872 = scmp.lt.s32.totalorder %s23, 1
      %s873 = scalar_select %p872, %s23, 1
      %s874 = smul.addr %s873, 2
      %s875 = smul.addr %s874, 4
      %s876 = scalar_lea.vmem %s10, %s875
      %p877 = scmp.lt.s32.totalorder %s23, 1
      %s878 = scalar_select %p877, %s23, 1
      %s879 = smul.addr %s878, 6
      %s880 = smul.addr %s879, 8
      %s881 = scalar_lea.vmem %s11, %s880
      // Predicated region
      $region61: #{netloss_forward.2} parent=59 // pred_check
        %p882 = pneg %p261
      $region62: #{netloss_forward.2} parent=59 // pred_check_branch
        %884 = sbr.rel (%p882) target = $region64
      $region63: #{netloss_forward.2} parent=59 // pred_region
        _
      $region64: #{netloss_forward.2} parent=59 // pred_fallthru
        _
      // Predicated region
      $region65: #{netloss_forward.2} parent=59 // pred_check
        %p885 = pneg %p287
      $region66: #{netloss_forward.2} parent=59 // pred_check_branch
        %887 = sbr.rel (%p885) target = $region68
      $region67: #{netloss_forward.2} parent=59 // pred_region
        _
      $region68: #{netloss_forward.2} parent=59 // pred_fallthru
        _
    $region60: #{netloss_forward.2} parent=5 // pred_fallthru
      _
    %p888 = scmp.le.s32.totalorder 2, %s18
    // Predicated region
    $region69: #{netloss_forward.2} parent=5 // pred_check
      %p889 = pneg %p888
    $region70: #{netloss_forward.2} parent=5 // pred_check_branch
      %891 = sbr.rel (%p889) target = $region72
    $region71: #{netloss_forward.2} parent=5 // pred_region
      %s892 = ssub.s32 %s18, 2
      // Predicated region
      $region73: #{netloss_forward.2} parent=71 // pred_check
        %p893 = pneg %p267
      $region74: #{netloss_forward.2} parent=71 // pred_check_branch
        %895 = sbr.rel (%p893) target = $region76
      $region75: #{netloss_forward.2} parent=71 // pred_region
        %p896 = scmp.lt.s32.totalorder %s24, 1
        %s897 = scalar_select %p896, %s24, 1
        %s898 = smul.addr %s897, 2
        %s899 = smul.addr %s898, 4
        %s900 = scalar_lea.vmem %s10, %s899
      $region76: #{netloss_forward.2} parent=71 // pred_fallthru
        _
      // Predicated region
      $region77: #{netloss_forward.2} parent=71 // pred_check
        %p901 = pneg %p293
      $region78: #{netloss_forward.2} parent=71 // pred_check_branch
        %903 = sbr.rel (%p901) target = $region80
      $region79: #{netloss_forward.2} parent=71 // pred_region
        %p904 = scmp.lt.s32.totalorder %s24, 1
        %s905 = scalar_select %p904, %s24, 1
        %s906 = smul.addr %s905, 6
        %s907 = smul.addr %s906, 8
        %s908 = scalar_lea.vmem %s11, %s907
      $region80: #{netloss_forward.2} parent=71 // pred_fallthru
        _
    $region72: #{netloss_forward.2} parent=5 // pred_fallthru
      _
  $region6: #{netloss_forward.2} parent=0 // loop_footer
    %s22 = sadd.s32 1, %s18
  $region7: #{netloss_forward.2} parent=0 // loop_footer_branch
    %17 = sbr.rel target = $region3
  $region8: #{netloss_forward.2} parent=0 // loop_exit
    _

// kernel: netloss_forward.3
$region0: #{netloss_forward.3}
  #allocation0 [shape = 'u32[]', space=smem, size = 0x4, offset = 0x4, fixed_abs, tag = 'smem constant byte address 0x4 - core index']
  #allocation1 [shape = 'u32[144,128]{1,0:T(1,128)}', space=vmem, size = 0x12000, scoped, tag = 'internal scratch']
  %s0 = inlined_call_operand.vmem [shape: f32[2,48,128], index: 0, kind: input, shape index: {}]
  %s1 = inlined_call_operand.vmem [shape: bf16[2,8,256], index: 1, kind: input, shape index: {}]
  %s2 = inlined_call_operand.vmem [shape: bf16[2,48,256], index: 2, kind: input, shape index: {}]
  %s3 = inlined_call_operand.vmem [shape: f32[2,1,128], index: 3, kind: output, shape index: {}]
  %s4 = sld [smem:[#allocation0]]
  $region45: #{netloss_forward.3} parent=0
    _
  %s6 = ssub.s32 1, %s4
  %s7 = scalar_select 0, %s6, %s4
  loop: start=0, step=1, limit=4
  $region2: #{netloss_forward.3} parent=0 // loop_pre_header
    _
  $region3: #{netloss_forward.3} parent=0 // loop_header
    %s9 = sphi 0, %s13
    %p10 = scmp.ge.s32.totalorder %s9, 4
    %s19 = sphi 0, %s21
    %s22 = sphi 0, %s19
    %s23 = sphi 0, %s22
    %s39 = sphi 0, %s23
    %s45 = sphi 0, %s47
    %s48 = sphi 0, %s45
    %s49 = sphi 0, %s48
    %s65 = sphi 0, %s49
    %s71 = sphi 0, %s73
    %s74 = sphi 0, %s71
    %s75 = sphi 0, %s74
    %s91 = sphi 0, %s75
    %s97 = sphi 0, %s99
    %s100 = sphi 0, %s97
    %s101 = sphi 0, %s100
    %s117 = sphi 0, %s101
  $region4: #{netloss_forward.3} parent=0 // loop_header_branch
    %12 = sbr.rel (%p10) target = $region8
  $region5: #{netloss_forward.3} parent=0 // loop_body
    %s14 = ssub.s32 %s9, 1
    %s15 = ssub.s32 %s9, 2
    %s16 = sadd.s32 %s9, 1
    %s17 = ssub.s32 %s9, %s16
    %p18 = scmp.eq.s32.totalorder %s17, 0
    %s20 = sadd.s32 %s19, 1
    %s21 = scalar_select %p18, %s19, %s20
    %p24 = pneg %p18
    %p25 = scmp.eq.s32.totalorder %s9, 1
    %p26 = por %p24, %p25
    %p27 = scmp.ne.s32.totalorder %s19, %s22
    %p28 = scmp.eq.s32.totalorder %s9, 0
    %p29 = por %p27, %p28
    %p30 = scmp.ne.s32.totalorder %s19, %s22
    %p31 = scmp.eq.s32.totalorder %s14, 1
    %p32 = por %p30, %p31
    %p33 = scmp.ne.s32.totalorder %s22, %s23
    %p34 = scmp.eq.s32.totalorder %s14, 0
    %p35 = por %p33, %p34
    %p36 = scmp.ne.s32.totalorder %s22, %s23
    %p37 = scmp.eq.s32.totalorder %s15, 1
    %p38 = por %p36, %p37
    %p40 = scmp.ne.s32.totalorder %s23, %s39
    %p41 = scmp.eq.s32.totalorder %s15, 0
    %p42 = por %p40, %p41
    %s43 = ssub.s32 %s9, %s16
    %p44 = scmp.eq.s32.totalorder %s43, 0
    %s46 = sadd.s32 %s45, 1
    %s47 = scalar_select %p44, %s45, %s46
    %p50 = pneg %p44
    %p51 = scmp.eq.s32.totalorder %s9, 1
    %p52 = por %p50, %p51
    %p53 = scmp.ne.s32.totalorder %s45, %s48
    %p54 = scmp.eq.s32.totalorder %s9, 0
    %p55 = por %p53, %p54
    %p56 = scmp.ne.s32.totalorder %s45, %s48
    %p57 = scmp.eq.s32.totalorder %s14, 1
    %p58 = por %p56, %p57
    %p59 = scmp.ne.s32.totalorder %s48, %s49
    %p60 = scmp.eq.s32.totalorder %s14, 0
    %p61 = por %p59, %p60
    %p62 = scmp.ne.s32.totalorder %s48, %s49
    %p63 = scmp.eq.s32.totalorder %s15, 1
    %p64 = por %p62, %p63
    %p66 = scmp.ne.s32.totalorder %s49, %s65
    %p67 = scmp.eq.s32.totalorder %s15, 0
    %p68 = por %p66, %p67
    %s69 = ssub.s32 %s9, %s16
    %p70 = scmp.eq.s32.totalorder %s69, 0
    %s72 = sadd.s32 %s71, 1
    %s73 = scalar_select %p70, %s71, %s72
    %p76 = pneg %p70
    %p77 = scmp.eq.s32.totalorder %s9, 1
    %p78 = por %p76, %p77
    %p79 = scmp.ne.s32.totalorder %s71, %s74
    %p80 = scmp.eq.s32.totalorder %s9, 0
    %p81 = por %p79, %p80
    %p82 = scmp.ne.s32.totalorder %s71, %s74
    %p83 = scmp.eq.s32.totalorder %s14, 1
    %p84 = por %p82, %p83
    %p85 = scmp.ne.s32.totalorder %s74, %s75
    %p86 = scmp.eq.s32.totalorder %s14, 0
    %p87 = por %p85, %p86
    %p88 = scmp.ne.s32.totalorder %s74, %s75
    %p89 = scmp.eq.s32.totalorder %s15, 1
    %p90 = por %p88, %p89
    %p92 = scmp.ne.s32.totalorder %s75, %s91
    %p93 = scmp.eq.s32.totalorder %s15, 0
    %p94 = por %p92, %p93
    %s95 = ssub.s32 %s9, %s16
    %p96 = scmp.eq.s32.totalorder %s95, 0
    %s98 = sadd.s32 %s97, 1
    %s99 = scalar_select %p96, %s97, %s98
    %p102 = pneg %p96
    %p103 = scmp.eq.s32.totalorder %s9, 1
    %p104 = por %p102, %p103
    %p105 = scmp.ne.s32.totalorder %s97, %s100
    %p106 = scmp.eq.s32.totalorder %s9, 0
    %p107 = por %p105, %p106
    %p108 = scmp.ne.s32.totalorder %s97, %s100
    %p109 = scmp.eq.s32.totalorder %s14, 1
    %p110 = por %p108, %p109
    %p111 = scmp.ne.s32.totalorder %s100, %s101
    %p112 = scmp.eq.s32.totalorder %s14, 0
    %p113 = por %p111, %p112
    %p114 = scmp.ne.s32.totalorder %s100, %s101
    %p115 = scmp.eq.s32.totalorder %s15, 1
    %p116 = por %p114, %p115
    %p118 = scmp.ne.s32.totalorder %s101, %s117
    %p119 = scmp.eq.s32.totalorder %s15, 0
    %p120 = por %p118, %p119
    %p121 = scmp.le.s32.totalorder 1, %s9
    %p122 = scmp.lt.s32.totalorder %s9, 3
    %p123 = pnand %p121, %p122
    %p124 = pneg %p123
    // Predicated region
    $region9: #{netloss_forward.3} parent=5 // pred_check
      _
    $region10: #{netloss_forward.3} parent=5 // pred_check_branch
      %126 = sbr.rel (%p123) target = $region12
    $region11: #{netloss_forward.3} parent=5 // pred_region
      %s127 = ssub.s32 %s9, 1
    $region12: #{netloss_forward.3} parent=5 // pred_fallthru
      _
    %p128 = scmp.lt.s32.totalorder %s9, 2
    // Predicated region
    $region13: #{netloss_forward.3} parent=5 // pred_check
      %p129 = pneg %p128
    $region14: #{netloss_forward.3} parent=5 // pred_check_branch
      %131 = sbr.rel (%p129) target = $region16
    $region15: #{netloss_forward.3} parent=5 // pred_region
      // Predicated region
      $region17: #{netloss_forward.3} parent=15 // pred_check
        %p132 = pneg %p29
      $region18: #{netloss_forward.3} parent=15 // pred_check_branch
        %134 = sbr.rel (%p132) target = $region20
      $region19: #{netloss_forward.3} parent=15 // pred_region
        %p135 = scmp.lt.s32.totalorder %s9, 1
        %s136 = scalar_select %p135, %s9, 1
        %s137 = smul.addr %s136, 6
        %s138 = smul.addr %s137, 8
        %s139 = scalar_lea.vmem %s0, %s138
      $region20: #{netloss_forward.3} parent=15 // pred_fallthru
        _
      // Predicated region
      $region21: #{netloss_forward.3} parent=15 // pred_check
        %p140 = pneg %p55
      $region22: #{netloss_forward.3} parent=15 // pred_check_branch
        %142 = sbr.rel (%p140) target = $region24
      $region23: #{netloss_forward.3} parent=15 // pred_region
        %p143 = scmp.lt.s32.totalorder %s9, 1
        %s144 = scalar_select %p143, %s9, 1
        %s145 = smul.addr %s144, 2
        %s146 = smul.addr %s145, 4
        %s147 = scalar_lea.vmem %s1, %s146
      $region24: #{netloss_forward.3} parent=15 // pred_fallthru
        _
      // Predicated region
      $region25: #{netloss_forward.3} parent=15 // pred_check
        %p148 = pneg %p81
      $region26: #{netloss_forward.3} parent=15 // pred_check_branch
        %150 = sbr.rel (%p148) target = $region28
      $region27: #{netloss_forward.3} parent=15 // pred_region
        %p151 = scmp.lt.s32.totalorder %s9, 1
        %s152 = scalar_select %p151, %s9, 1
        %s153 = smul.addr %s152, 12
        %s154 = smul.addr %s153, 4
        %s155 = scalar_lea.vmem %s2, %s154
      $region28: #{netloss_forward.3} parent=15 // pred_fallthru
        _
    $region16: #{netloss_forward.3} parent=5 // pred_fallthru
      _
    %p156 = scmp.le.s32.totalorder 1, %s9
    %p157 = scmp.lt.s32.totalorder %s9, 3
    %p158 = pnand %p156, %p157
    %p159 = pneg %p158
    // Predicated region
    $region29: #{netloss_forward.3} parent=5 // pred_check
      _
    $region30: #{netloss_forward.3} parent=5 // pred_check_branch
      %161 = sbr.rel (%p158) target = $region32
    $region31: #{netloss_forward.3} parent=5 // pred_region
      %s162 = ssub.s32 %s9, 1
      %p163 = scmp.lt.s32.totalorder %s14, 1
      %s164 = scalar_select %p163, %s14, 1
      %s165 = smul.addr %s164, 6
      %s166 = smul.addr %s165, 8
      %s167 = scalar_lea.vmem %s0, %s166
      %p168 = pneg %p35
      %p169 = pneg %p32
      %p170 = scmp.lt.s32.totalorder %s14, 1
      %s171 = scalar_select %p170, %s14, 1
      %s172 = smul.addr %s171, 2
      %s173 = smul.addr %s172, 4
      %s174 = scalar_lea.vmem %s1, %s173
      %p175 = pneg %p61
      %p176 = pneg %p58
      %p177 = scmp.lt.s32.totalorder %s14, 1
      %s178 = scalar_select %p177, %s14, 1
      %s179 = smul.addr %s178, 12
      %s180 = smul.addr %s179, 4
      %s181 = scalar_lea.vmem %s2, %s180
      %p182 = pneg %p87
      %p183 = pneg %p84
      %p184 = pneg %p113
      %p185 = pneg %p110
      %p186 = scmp.lt.s32.totalorder %s14, 1
      %s187 = scalar_select %p186, %s14, 1
      %s188 = scalar_lea.vmem %s3, %s187
      %p189 = scmp.lt.s32.totalorder %s14, 1
      %s190 = scalar_select %p189, %s14, 1
      %s191 = smul.addr %s190, 6
      %s192 = smul.addr %s191, 8
      %s193 = scalar_lea.vmem %s0, %s192
      %p194 = scmp.lt.s32.totalorder %s14, 1
      %s195 = scalar_select %p194, %s14, 1
      %s196 = smul.addr %s195, 2
      %s197 = smul.addr %s196, 4
      %s198 = scalar_lea.vmem %s1, %s197
      %p199 = scmp.lt.s32.totalorder %s14, 1
      %s200 = scalar_select %p199, %s14, 1
      %s201 = smul.addr %s200, 12
      %s202 = smul.addr %s201, 4
      %s203 = scalar_lea.vmem %s2, %s202
      %p204 = scmp.lt.s32.totalorder %s14, 1
      %s205 = scalar_select %p204, %s14, 1
      %s206 = scalar_lea.vmem %s3, %s205
      %v208 = vld [vmem:[%s193] sm:$0xff]
      %v209 = vld [vmem:[%s193 + $0x8] sm:$0xff]
      %v210 = vld [vmem:[%s193 + $0x10] sm:$0xff]
      %v211 = vld [vmem:[%s193 + $0x18] sm:$0xff]
      %v212 = vld [vmem:[%s193 + $0x20] sm:$0xff]
      %v213 = vld [vmem:[%s193 + $0x28] sm:$0xff]
      %v214 = vcvt.f32.s32.to.zero.pseudo %v208
      %v215 = vcvt.f32.s32.to.zero.pseudo %v209
      %v216 = vcvt.f32.s32.to.zero.pseudo %v210
      %v217 = vcvt.f32.s32.to.zero.pseudo %v211
      %v218 = vcvt.f32.s32.to.zero.pseudo %v212
      %v219 = vcvt.f32.s32.to.zero.pseudo %v213
      %226 = vrot.lane.b32.xlu0 %v208, 124
      %v227 = vpop.permute.xlu0 %226
      %228 = vrot.lane.b32.xlu0 %v209, 124
      %v229 = vpop.permute.xlu0 %228
      %230 = vrot.lane.b32.xlu0 %v210, 124
      %v231 = vpop.permute.xlu0 %230
      %232 = vrot.lane.b32.xlu0 %v211, 124
      %v233 = vpop.permute.xlu0 %232
      %234 = vrot.lane.b32.xlu0 %v212, 124
      %v235 = vpop.permute.xlu0 %234
      %236 = vrot.lane.b32.xlu0 %v213, 124
      %v237 = vpop.permute.xlu0 %236
      %v244 = vsub.f32 %v208, %v227
      %v245 = vsub.f32 %v209, %v229
      %v246 = vsub.f32 %v210, %v231
      %v247 = vsub.f32 %v211, %v233
      %v248 = vsub.f32 %v212, %v235
      %v249 = vsub.f32 %v213, %v237
      %v250 = vand.u32 2147483647, %v244
      %v251 = vand.u32 2147483647, %v245
      %v252 = vand.u32 2147483647, %v246
      %v253 = vand.u32 2147483647, %v247
      %v254 = vand.u32 2147483647, %v248
      %v255 = vand.u32 2147483647, %v249
      %vm256 = vcmp.lt.f32.partialorder %v250, 1.0
      %vm257 = vcmp.lt.f32.partialorder %v251, 1.0
      %vm258 = vcmp.lt.f32.partialorder %v252, 1.0
      %vm259 = vcmp.lt.f32.partialorder %v253, 1.0
      %vm260 = vcmp.lt.f32.partialorder %v254, 1.0
      %vm261 = vcmp.lt.f32.partialorder %v255, 1.0
      %v262 = vmul.f32 %v244, 0.5
      %v263 = vmul.f32 %v245, 0.5
      %v264 = vmul.f32 %v246, 0.5
      %v265 = vmul.f32 %v247, 0.5
      %v266 = vmul.f32 %v248, 0.5
      %v267 = vmul.f32 %v249, 0.5
      %v268 = vmul.f32 %v262, %v244
      %v269 = vmul.f32 %v263, %v245
      %v270 = vmul.f32 %v264, %v246
      %v271 = vmul.f32 %v265, %v247
      %v272 = vmul.f32 %v266, %v248
      %v273 = vmul.f32 %v267, %v249
      %v274 = vsub.f32 %v250, 0.5
      %v275 = vsub.f32 %v251, 0.5
      %v276 = vsub.f32 %v252, 0.5
      %v277 = vsub.f32 %v253, 0.5
      %v278 = vsub.f32 %v254, 0.5
      %v279 = vsub.f32 %v255, 0.5
      %v280 = vsel %vm256, %v268, %v274
      %v281 = vsel %vm257, %v269, %v275
      %v282 = vsel %vm258, %v270, %v276
      %v283 = vsel %vm259, %v271, %v277
      %v284 = vsel %vm260, %v272, %v278
      %v285 = vsel %vm261, %v273, %v279
      %286 = vset.pattern.permute.xlu0 8
      %287 = vperm.xlu0 %286, %v208
      %v288 = vpop.permute.xlu0 %287
      %290 = vset.pattern.permute.xlu0 8
      %291 = vperm.xlu0 %290, %v209
      %v292 = vpop.permute.xlu0 %291
      %294 = vset.pattern.permute.xlu0 8
      %295 = vperm.xlu0 %294, %v210
      %v296 = vpop.permute.xlu0 %295
      %298 = vset.pattern.permute.xlu0 8
      %299 = vperm.xlu0 %298, %v211
      %v300 = vpop.permute.xlu0 %299
      %302 = vset.pattern.permute.xlu0 8
      %303 = vperm.xlu0 %302, %v212
      %v304 = vpop.permute.xlu0 %303
      %306 = vset.pattern.permute.xlu0 8
      %307 = vperm.xlu0 %306, %v213
      %v308 = vpop.permute.xlu0 %307
      %v310 = vmul.f32 %v280, %v288
      %v311 = vmul.f32 %v281, %v292
      %v312 = vmul.f32 %v282, %v296
      %v313 = vmul.f32 %v283, %v300
      %v314 = vmul.f32 %v284, %v304
      %v315 = vmul.f32 %v285, %v308
      %vm316 = vcmask 31744
      %v317 = vsel %vm316, %v310, 0.0
      %v318 = vsel %vm316, %v311, 0.0
      %v319 = vadd.f32 %v317, %v318
      %v320 = vsel %vm316, %v312, 0.0
      %v321 = vadd.f32 %v319, %v320
      %v322 = vsel %vm316, %v313, 0.0
      %v323 = vadd.f32 %v321, %v322
      %v324 = vsel %vm316, %v314, 0.0
      %v325 = vadd.f32 %v323, %v324
      %v326 = vsel %vm316, %v315, 0.0
      %v327 = vadd.f32 %v325, %v326
      %328 = vadd.xlane.f32.xlu0 %v327
      %v329 = vpop.xlane.xlu0 %328
      %v330 = vrot.slane %v329, 4
      %v331 = vadd.f32 %v329, %v330
      %v332 = vrot.slane %v331, 2
      %v333 = vadd.f32 %v331, %v332
      %v334 = vrot.slane %v333, 1
      %v335 = vadd.f32 %v333, %v334
      %s336 = vtos %v335
      %s337 = sadd.f32 %s336, 0.0
      %vm338 = vcmask 121936
      %v339 = vsel %vm338, %v208, -inf
      %340 = vmax.xlane.f32.xlu0 %v339
      %v341 = vpop.xlane.xlu0 %340
      %v342 = vsel %vm338, %v209, -inf
      %343 = vmax.xlane.f32.xlu0 %v342
      %v344 = vpop.xlane.xlu0 %343
      %v345 = vsel %vm338, %v210, -inf
      %346 = vmax.xlane.f32.xlu0 %v345
      %v347 = vpop.xlane.xlu0 %346
      %v348 = vsel %vm338, %v211, -inf
      %349 = vmax.xlane.f32.xlu0 %v348
      %v350 = vpop.xlane.xlu0 %349
      %v351 = vsel %vm338, %v212, -inf
      %352 = vmax.xlane.f32.xlu0 %v351
      %v353 = vpop.xlane.xlu0 %352
      %v354 = vsel %vm338, %v213, -inf
      %355 = vmax.xlane.f32.xlu0 %v354
      %v356 = vpop.xlane.xlu0 %355
      %v357 = vsub.f32 %v208, %v341
      %v358 = vsub.f32 %v209, %v344
      %v359 = vsub.f32 %v210, %v347
      %v360 = vsub.f32 %v211, %v350
      %v361 = vsub.f32 %v212, %v353
      %v362 = vsub.f32 %v213, %v356
      %v363 = vmul.f32 %v357, 1.442695
      %v364 = vpow.pop %v363
      %v365 = vmul.f32 %v358, 1.442695
      %v366 = vpow.pop %v365
      %v367 = vmul.f32 %v359, 1.442695
      %v368 = vpow.pop %v367
      %v369 = vmul.f32 %v360, 1.442695
      %v370 = vpow.pop %v369
      %v371 = vmul.f32 %v361, 1.442695
      %v372 = vpow.pop %v371
      %v373 = vmul.f32 %v362, 1.442695
      %v374 = vpow.pop %v373
      %381 = vrot.lane.b32.xlu0 %v364, 118
      %v382 = vpop.permute.xlu0 %381
      %383 = vrot.lane.b32.xlu0 %v366, 118
      %v384 = vpop.permute.xlu0 %383
      %385 = vrot.lane.b32.xlu0 %v368, 118
      %v386 = vpop.permute.xlu0 %385
      %387 = vrot.lane.b32.xlu0 %v370, 118
      %v388 = vpop.permute.xlu0 %387
      %389 = vrot.lane.b32.xlu0 %v372, 118
      %v390 = vpop.permute.xlu0 %389
      %391 = vrot.lane.b32.xlu0 %v374, 118
      %v392 = vpop.permute.xlu0 %391
      %vm399 = vcmask 39936
      %v400 = vsel %vm399, %v382, 0.0
      %401 = vadd.xlane.f32.xlu0 %v400
      %v402 = vpop.xlane.xlu0 %401
      %v403 = vsel %vm399, %v384, 0.0
      %404 = vadd.xlane.f32.xlu0 %v403
      %v405 = vpop.xlane.xlu0 %404
      %v406 = vsel %vm399, %v386, 0.0
      %407 = vadd.xlane.f32.xlu0 %v406
      %v408 = vpop.xlane.xlu0 %407
      %v409 = vsel %vm399, %v388, 0.0
      %410 = vadd.xlane.f32.xlu0 %v409
      %v411 = vpop.xlane.xlu0 %410
      %v412 = vsel %vm399, %v390, 0.0
      %413 = vadd.xlane.f32.xlu0 %v412
      %v414 = vpop.xlane.xlu0 %413
      %v415 = vsel %vm399, %v392, 0.0
      %416 = vadd.xlane.f32.xlu0 %v415
      %v417 = vpop.xlane.xlu0 %416
      %v418 = vlog2.pop %v402
      %v419 = vmul.f32 %v418, 0.6931472
      %v420 = vlog2.pop %v405
      %v421 = vmul.f32 %v420, 0.6931472
      %v422 = vlog2.pop %v408
      %v423 = vmul.f32 %v422, 0.6931472
      %v424 = vlog2.pop %v411
      %v425 = vmul.f32 %v424, 0.6931472
      %v426 = vlog2.pop %v414
      %v427 = vmul.f32 %v426, 0.6931472
      %v428 = vlog2.pop %v417
      %v429 = vmul.f32 %v428, 0.6931472
      %v430 = vadd.f32 %v341, %v419
      %v431 = vadd.f32 %v344, %v421
      %v432 = vadd.f32 %v347, %v423
      %v433 = vadd.f32 %v350, %v425
      %v434 = vadd.f32 %v353, %v427
      %v435 = vadd.f32 %v356, %v429
      %v436 = vlaneseq
      %v437 = vand.u32 %v436, 127
      %438 = vset.pattern.permute.xlu0 9
      %439 = vperm.xlu0 %438, %v214
      %v440 = vpop.permute.xlu0 %439
      %441 = vset.pattern.permute.xlu0 9
      %442 = vperm.xlu0 %441, %v215
      %v443 = vpop.permute.xlu0 %442
      %444 = vset.pattern.permute.xlu0 9
      %445 = vperm.xlu0 %444, %v216
      %v446 = vpop.permute.xlu0 %445
      %447 = vset.pattern.permute.xlu0 9
      %448 = vperm.xlu0 %447, %v217
      %v449 = vpop.permute.xlu0 %448
      %450 = vset.pattern.permute.xlu0 9
      %451 = vperm.xlu0 %450, %v218
      %v452 = vpop.permute.xlu0 %451
      %453 = vset.pattern.permute.xlu0 9
      %454 = vperm.xlu0 %453, %v219
      %v455 = vpop.permute.xlu0 %454
      %vm456 = vcmp.eq.s32.totalorder %v437, %v440
      %vm457 = vcmp.eq.s32.totalorder %v437, %v443
      %vm458 = vcmp.eq.s32.totalorder %v437, %v446
      %vm459 = vcmp.eq.s32.totalorder %v437, %v449
      %vm460 = vcmp.eq.s32.totalorder %v437, %v452
      %vm461 = vcmp.eq.s32.totalorder %v437, %v455
      %462 = vrot.lane.b32.xlu0 %v208, 118
      %v463 = vpop.permute.xlu0 %462
      %464 = vrot.lane.b32.xlu0 %v209, 118
      %v465 = vpop.permute.xlu0 %464
      %466 = vrot.lane.b32.xlu0 %v210, 118
      %v467 = vpop.permute.xlu0 %466
      %468 = vrot.lane.b32.xlu0 %v211, 118
      %v469 = vpop.permute.xlu0 %468
      %470 = vrot.lane.b32.xlu0 %v212, 118
      %v471 = vpop.permute.xlu0 %470
      %472 = vrot.lane.b32.xlu0 %v213, 118
      %v473 = vpop.permute.xlu0 %472
      %v480 = vsel %vm456, %v463, 0.0
      %v481 = vsel %vm457, %v465, 0.0
      %v482 = vsel %vm458, %v467, 0.0
      %v483 = vsel %vm459, %v469, 0.0
      %v484 = vsel %vm460, %v471, 0.0
      %v485 = vsel %vm461, %v473, 0.0
      %v486 = vsel %vm399, %v480, 0.0
      %487 = vadd.xlane.f32.xlu0 %v486
      %v488 = vpop.xlane.xlu0 %487
      %v489 = vsel %vm399, %v481, 0.0
      %490 = vadd.xlane.f32.xlu0 %v489
      %v491 = vpop.xlane.xlu0 %490
      %v492 = vsel %vm399, %v482, 0.0
      %493 = vadd.xlane.f32.xlu0 %v492
      %v494 = vpop.xlane.xlu0 %493
      %v495 = vsel %vm399, %v483, 0.0
      %496 = vadd.xlane.f32.xlu0 %v495
      %v497 = vpop.xlane.xlu0 %496
      %v498 = vsel %vm399, %v484, 0.0
      %499 = vadd.xlane.f32.xlu0 %v498
      %v500 = vpop.xlane.xlu0 %499
      %v501 = vsel %vm399, %v485, 0.0
      %502 = vadd.xlane.f32.xlu0 %v501
      %v503 = vpop.xlane.xlu0 %502
      %v504 = vsub.f32 %v430, %v488
      %v505 = vsub.f32 %v431, %v491
      %v506 = vsub.f32 %v432, %v494
      %v507 = vsub.f32 %v433, %v497
      %v508 = vsub.f32 %v434, %v500
      %v509 = vsub.f32 %v435, %v503
      %vm510 = vcmask 7168
      %v511 = vsel %vm510, %v504, 0.0
      %v512 = vsel %vm510, %v505, 0.0
      %v513 = vadd.f32 %v511, %v512
      %v514 = vsel %vm510, %v506, 0.0
      %v515 = vadd.f32 %v513, %v514
      %v516 = vsel %vm510, %v507, 0.0
      %v517 = vadd.f32 %v515, %v516
      %v518 = vsel %vm510, %v508, 0.0
      %v519 = vadd.f32 %v517, %v518
      %v520 = vsel %vm510, %v509, 0.0
      %v521 = vadd.f32 %v519, %v520
      %522 = vadd.xlane.f32.xlu0 %v521
      %v523 = vpop.xlane.xlu0 %522
      %v524 = vrot.slane %v523, 4
      %v525 = vadd.f32 %v523, %v524
      %v526 = vrot.slane %v525, 2
      %v527 = vadd.f32 %v525, %v526
      %v528 = vrot.slane %v527, 1
      %v529 = vadd.f32 %v527, %v528
      %s530 = vtos %v529
      %s531 = sadd.f32 %s530, 0.0
      %v532 = vpack.c.bf16 %v209, %v208
      %v533 = vpack.c.bf16 %v211, %v210
      %v534 = vpack.c.bf16 %v213, %v212
      %v535 = vld [vmem:[%s198] sm:$0xff]
      %539 = vrot.lane.b32.xlu0 %v532, 112
      %v540 = vpop.permute.xlu0 %539
      %541 = vrot.lane.b32.xlu0 %v533, 112
      %v542 = vpop.permute.xlu0 %541
      %543 = vrot.lane.b32.xlu0 %v534, 112
      %v544 = vpop.permute.xlu0 %543
      %v546 = vunpack.c.l.b16 %v535
      %v547 = vunpack.c.h.b16 %v535
      %v548 = vpack.c.b16 %v546, %v546
      %v549 = vpack.c.b16 %v547, %v547
      %vm550 = vcmask 64512
      %v552 = vsel %vm550, %v540, 0
      %v555 = vsel %vm550, %v542, 0
      %v558 = vsel %vm550, %v544, 0
      %vm560 = vcmask 1043456
      %v562 = vsel %vm560, %v548, 0
      %v565 = vsel %vm560, %v549, 0
      %567 = vmatprep.subr.bf16.mxu0 %v565
      %568 = vmatpush1.bf16.msra.mxu0 %v562
      %569 = vmatprep.subr.bf16.mxu0 0
      %570 = vmatpush1.bf16.msra.mxu0 0
      %571 = vmatprep.subr.bf16.mxu0 0
      %572 = vmatpush1.bf16.msra.mxu0 0
      %573 = vmatprep.subr.bf16.mxu0 0
      %574 = vmatpush1.bf16.msra.mxu0 0
      %575 = vmatprep.subr.bf16.mxu0 0
      %576 = vmatpush1.bf16.msra.mxu0 0
      %577 = vmatprep.subr.bf16.mxu0 0
      %578 = vmatpush1.bf16.msra.mxu0 0
      %579 = vmatprep.subr.bf16.mxu0 0
      %580 = vmatpush1.bf16.msra.mxu0 0
      %581 = vmatprep.subr.bf16.mxu0 0
      %582 = vmatpush1.bf16.msra.mxu0 0
      %583 = vmatprep.subr.bf16.mxu0 0
      %584 = vmatpush1.bf16.msra.mxu0 0
      %585 = vmatprep.subr.bf16.mxu0 0
      %586 = vmatpush1.bf16.msra.mxu0 0
      %587 = vmatprep.subr.bf16.mxu0 0
      %588 = vmatpush1.bf16.msra.mxu0 0
      %589 = vmatprep.subr.bf16.mxu0 0
      %590 = vmatpush1.bf16.msra.mxu0 0
      %591 = vmatprep.subr.bf16.mxu0 0
      %592 = vmatpush1.bf16.msra.mxu0 0
      %593 = vmatprep.subr.bf16.mxu0 0
      %594 = vmatpush1.bf16.msra.mxu0 0
      %595 = vmatprep.subr.bf16.mxu0 0
      %596 = vmatpush1.bf16.msra.mxu0 0
      %597 = vmatprep.subr.bf16.mxu0 0
      %598 = vmatpush1.bf16.msra.mxu0 0
      %599 = vmatprep.mubr.bf16.mxu0 0
      %600 = vmatmul.mubr.bf16.gmra.mrb[0].mxu0 %v552
      %v601 = vpop.f32.mrb[0].mxu0
      %v602 = vadd.f32 0.0, %v601
      %v603 = vpop.f32.mrb[0].mxu0
      %v604 = vadd.f32 0.0, %v603
      %v605 = vpop.f32.mrb[0].mxu0
      %v606 = vadd.f32 0.0, %v605
      %v607 = vpop.f32.mrb[0].mxu0
      %v608 = vadd.f32 0.0, %v607
      %609 = vmatprep.mubr.bf16.mxu0 0
      %610 = vmatmul.mubr.bf16.gmra.mrb[0].mxu0 %v555
      %v611 = vpop.f32.mrb[0].mxu0
      %v612 = vadd.f32 0.0, %v611
      %v613 = vpop.f32.mrb[0].mxu0
      %v614 = vadd.f32 0.0, %v613
      %v615 = vpop.f32.mrb[0].mxu0
      %v616 = vadd.f32 0.0, %v615
      %v617 = vpop.f32.mrb[0].mxu0
      %v618 = vadd.f32 0.0, %v617
      %619 = vmatprep.mubr.bf16.mxu0 0
      %620 = vmatmul.mubr.bf16.gmra.mrb[0].mxu0 %v558
      %v621 = vpop.f32.mrb[0].mxu0
      %v622 = vadd.f32 0.0, %v621
      %v623 = vpop.f32.mrb[0].mxu0
      %v624 = vadd.f32 0.0, %v623
      %v625 = vpop.f32.mrb[0].mxu0
      %v626 = vadd.f32 0.0, %v625
      %v627 = vpop.f32.mrb[0].mxu0
      %v628 = vadd.f32 0.0, %v627
      %629 = vdwg.mxu0
      %v630 = vld [vmem:[%s203] sm:$0xff]
      %v631 = vld [vmem:[%s203 + $0x8] sm:$0xff]
      %v632 = vld [vmem:[%s203 + $0x10] sm:$0xff]
      %v633 = vld [vmem:[%s203 + $0x18] sm:$0xff]
      %v634 = vld [vmem:[%s203 + $0x20] sm:$0xff]
      %v635 = vld [vmem:[%s203 + $0x28] sm:$0xff]
      %v636 = vunpack.c.l.bf16 %v630
      %v637 = vunpack.c.h.bf16 %v630
      %v638 = vunpack.c.l.bf16 %v631
      %v639 = vunpack.c.h.bf16 %v631
      %v640 = vunpack.c.l.bf16 %v632
      %v641 = vunpack.c.h.bf16 %v632
      %v642 = vunpack.c.l.bf16 %v633
      %v643 = vunpack.c.h.bf16 %v633
      %v644 = vunpack.c.l.bf16 %v634
      %v645 = vunpack.c.h.bf16 %v634
      %v646 = vunpack.c.l.bf16 %v635
      %v647 = vunpack.c.h.bf16 %v635
      %v648 = vmax.f32 %v602, 0.0
      %v649 = vmax.f32 %v604, 0.0
      %v650 = vmax.f32 %v606, 0.0
      %v651 = vmax.f32 %v608, 0.0
      %v652 = vmax.f32 %v612, 0.0
      %v653 = vmax.f32 %v614, 0.0
      %v654 = vmax.f32 %v616, 0.0
      %v655 = vmax.f32 %v618, 0.0
      %v656 = vmax.f32 %v622, 0.0
      %v657 = vmax.f32 %v624, 0.0
      %v658 = vmax.f32 %v626, 0.0
      %v659 = vmax.f32 %v628, 0.0
      %v660 = vmul.f32 %v602, %v636
      %v661 = vmul.f32 %v604, %v637
      %v662 = vmul.f32 %v606, %v638
      %v663 = vmul.f32 %v608, %v639
      %v664 = vmul.f32 %v612, %v640
      %v665 = vmul.f32 %v614, %v641
      %v666 = vmul.f32 %v616, %v642
      %v667 = vmul.f32 %v618, %v643
      %v668 = vmul.f32 %v622, %v644
      %v669 = vmul.f32 %v624, %v645
      %v670 = vmul.f32 %v626, %v646
      %v671 = vmul.f32 %v628, %v647
      %v672 = vsub.f32 %v648, %v660
      %v673 = vsub.f32 %v649, %v661
      %v674 = vsub.f32 %v650, %v662
      %v675 = vsub.f32 %v651, %v663
      %v676 = vsub.f32 %v652, %v664
      %v677 = vsub.f32 %v653, %v665
      %v678 = vsub.f32 %v654, %v666
      %v679 = vsub.f32 %v655, %v667
      %v680 = vsub.f32 %v656, %v668
      %v681 = vsub.f32 %v657, %v669
      %v682 = vsub.f32 %v658, %v670
      %v683 = vsub.f32 %v659, %v671
      %v684 = vand.u32 2147483647, %v602
      %v685 = vand.u32 2147483647, %v604
      %v686 = vand.u32 2147483647, %v606
      %v687 = vand.u32 2147483647, %v608
      %v688 = vand.u32 2147483647, %v612
      %v689 = vand.u32 2147483647, %v614
      %v690 = vand.u32 2147483647, %v616
      %v691 = vand.u32 2147483647, %v618
      %v692 = vand.u32 2147483647, %v622
      %v693 = vand.u32 2147483647, %v624
      %v694 = vand.u32 2147483647, %v626
      %v695 = vand.u32 2147483647, %v628
      %v696 = vsub.f32 0.0, %v684
      %v697 = vsub.f32 0.0, %v685
      %v698 = vsub.f32 0.0, %v686
      %v699 = vsub.f32 0.0, %v687
      %v700 = vsub.f32 0.0, %v688
      %v701 = vsub.f32 0.0, %v689
      %v702 = vsub.f32 0.0, %v690
      %v703 = vsub.f32 0.0, %v691
      %v704 = vsub.f32 0.0, %v692
      %v705 = vsub.f32 0.0, %v693
      %v706 = vsub.f32 0.0, %v694
      %v707 = vsub.f32 0.0, %v695
      %v708 = vmul.f32 %v696, 1.442695
      %v709 = vpow.pop %v708
      %v710 = vmul.f32 %v697, 1.442695
      %v711 = vpow.pop %v710
      %v712 = vmul.f32 %v698, 1.442695
      %v713 = vpow.pop %v712
      %v714 = vmul.f32 %v699, 1.442695
      %v715 = vpow.pop %v714
      %v716 = vmul.f32 %v700, 1.442695
      %v717 = vpow.pop %v716
      %v718 = vmul.f32 %v701, 1.442695
      %v719 = vpow.pop %v718
      %v720 = vmul.f32 %v702, 1.442695
      %v721 = vpow.pop %v720
      %v722 = vmul.f32 %v703, 1.442695
      %v723 = vpow.pop %v722
      %v724 = vmul.f32 %v704, 1.442695
      %v725 = vpow.pop %v724
      %v726 = vmul.f32 %v705, 1.442695
      %v727 = vpow.pop %v726
      %v728 = vmul.f32 %v706, 1.442695
      %v729 = vpow.pop %v728
      %v730 = vmul.f32 %v707, 1.442695
      %v731 = vpow.pop %v730
      %v732 = vadd.f32 %v709, 1.0
      %v733 = vlog2.pop %v732
      %v734 = vmul.f32 %v733, 0.6931472
      %v735 = vmul.f32 -0.5, %v709
      %v736 = vadd.f32 %v735, 1.0
      %v737 = vmul.f32 %v736, %v709
      %v738 = vand.u32 2147483647, %v709
      %vm739 = vcmp.lt.f32.partialorder %v738, 0.0004427343
      %v740 = vsel %vm739, %v737, %v734
      %v741 = vadd.f32 %v711, 1.0
      %v742 = vlog2.pop %v741
      %v743 = vmul.f32 %v742, 0.6931472
      %v744 = vmul.f32 -0.5, %v711
      %v745 = vadd.f32 %v744, 1.0
      %v746 = vmul.f32 %v745, %v711
      %v747 = vand.u32 2147483647, %v711
      %vm748 = vcmp.lt.f32.partialorder %v747, 0.0004427343
      %v749 = vsel %vm748, %v746, %v743
      %v750 = vadd.f32 %v713, 1.0
      %v751 = vlog2.pop %v750
      %v752 = vmul.f32 %v751, 0.6931472
      %v753 = vmul.f32 -0.5, %v713
      %v754 = vadd.f32 %v753, 1.0
      %v755 = vmul.f32 %v754, %v713
      %v756 = vand.u32 2147483647, %v713
      %vm757 = vcmp.lt.f32.partialorder %v756, 0.0004427343
      %v758 = vsel %vm757, %v755, %v752
      %v759 = vadd.f32 %v715, 1.0
      %v760 = vlog2.pop %v759
      %v761 = vmul.f32 %v760, 0.6931472
      %v762 = vmul.f32 -0.5, %v715
      %v763 = vadd.f32 %v762, 1.0
      %v764 = vmul.f32 %v763, %v715
      %v765 = vand.u32 2147483647, %v715
      %vm766 = vcmp.lt.f32.partialorder %v765, 0.0004427343
      %v767 = vsel %vm766, %v764, %v761
      %v768 = vadd.f32 %v717, 1.0
      %v769 = vlog2.pop %v768
      %v770 = vmul.f32 %v769, 0.6931472
      %v771 = vmul.f32 -0.5, %v717
      %v772 = vadd.f32 %v771, 1.0
      %v773 = vmul.f32 %v772, %v717
      %v774 = vand.u32 2147483647, %v717
      %vm775 = vcmp.lt.f32.partialorder %v774, 0.0004427343
      %v776 = vsel %vm775, %v773, %v770
      %v777 = vadd.f32 %v719, 1.0
      %v778 = vlog2.pop %v777
      %v779 = vmul.f32 %v778, 0.6931472
      %v780 = vmul.f32 -0.5, %v719
      %v781 = vadd.f32 %v780, 1.0
      %v782 = vmul.f32 %v781, %v719
      %v783 = vand.u32 2147483647, %v719
      %vm784 = vcmp.lt.f32.partialorder %v783, 0.0004427343
      %v785 = vsel %vm784, %v782, %v779
      %v786 = vadd.f32 %v721, 1.0
      %v787 = vlog2.pop %v786
      %v788 = vmul.f32 %v787, 0.6931472
      %v789 = vmul.f32 -0.5, %v721
      %v790 = vadd.f32 %v789, 1.0
      %v791 = vmul.f32 %v790, %v721
      %v792 = vand.u32 2147483647, %v721
      %vm793 = vcmp.lt.f32.partialorder %v792, 0.0004427343
      %v794 = vsel %vm793, %v791, %v788
      %v795 = vadd.f32 %v723, 1.0
      %v796 = vlog2.pop %v795
      %v797 = vmul.f32 %v796, 0.6931472
      %v798 = vmul.f32 -0.5, %v723
      %v799 = vadd.f32 %v798, 1.0
      %v800 = vmul.f32 %v799, %v723
      %v801 = vand.u32 2147483647, %v723
      %vm802 = vcmp.lt.f32.partialorder %v801, 0.0004427343
      %v803 = vsel %vm802, %v800, %v797
      %v804 = vadd.f32 %v725, 1.0
      %v805 = vlog2.pop %v804
      %v806 = vmul.f32 %v805, 0.6931472
      %v807 = vmul.f32 -0.5, %v725
      %v808 = vadd.f32 %v807, 1.0
      %v809 = vmul.f32 %v808, %v725
      %v810 = vand.u32 2147483647, %v725
      %vm811 = vcmp.lt.f32.partialorder %v810, 0.0004427343
      %v812 = vsel %vm811, %v809, %v806
      %v813 = vadd.f32 %v727, 1.0
      %v814 = vlog2.pop %v813
      %v815 = vmul.f32 %v814, 0.6931472
      %v816 = vmul.f32 -0.5, %v727
      %v817 = vadd.f32 %v816, 1.0
      %v818 = vmul.f32 %v817, %v727
      %v819 = vand.u32 2147483647, %v727
      %vm820 = vcmp.lt.f32.partialorder %v819, 0.0004427343
      %v821 = vsel %vm820, %v818, %v815
      %v822 = vadd.f32 %v729, 1.0
      %v823 = vlog2.pop %v822
      %v824 = vmul.f32 %v823, 0.6931472
      %v825 = vmul.f32 -0.5, %v729
      %v826 = vadd.f32 %v825, 1.0
      %v827 = vmul.f32 %v826, %v729
      %v828 = vand.u32 2147483647, %v729
      %vm829 = vcmp.lt.f32.partialorder %v828, 0.0004427343
      %v830 = vsel %vm829, %v827, %v824
      %v831 = vadd.f32 %v731, 1.0
      %v832 = vlog2.pop %v831
      %v833 = vmul.f32 %v832, 0.6931472
      %v834 = vmul.f32 -0.5, %v731
      %v835 = vadd.f32 %v834, 1.0
      %v836 = vmul.f32 %v835, %v731
      %v837 = vand.u32 2147483647, %v731
      %vm838 = vcmp.lt.f32.partialorder %v837, 0.0004427343
      %v839 = vsel %vm838, %v836, %v833
      %v840 = vadd.f32 %v672, %v740
      %v841 = vadd.f32 %v673, %v749
      %v842 = vadd.f32 %v674, %v758
      %v843 = vadd.f32 %v675, %v767
      %v844 = vadd.f32 %v676, %v776
      %v845 = vadd.f32 %v677, %v785
      %v846 = vadd.f32 %v678, %v794
      %v847 = vadd.f32 %v679, %v803
      %v848 = vadd.f32 %v680, %v812
      %v849 = vadd.f32 %v681, %v821
      %v850 = vadd.f32 %v682, %v830
      %v851 = vadd.f32 %v683, %v839
      %v852 = vmul.f32 %v840, %v288
      %v853 = vmul.f32 %v841, %v288
      %v854 = vmul.f32 %v842, %v292
      %v855 = vmul.f32 %v843, %v292
      %v856 = vmul.f32 %v844, %v296
      %v857 = vmul.f32 %v845, %v296
      %v858 = vmul.f32 %v846, %v300
      %v859 = vmul.f32 %v847, %v300
      %v860 = vmul.f32 %v848, %v304
      %v861 = vmul.f32 %v849, %v304
      %v862 = vmul.f32 %v850, %v308
      %v863 = vmul.f32 %v851, %v308
      %v864 = vadd.f32 %v852, %v853
      %v865 = vadd.f32 %v864, %v854
      %v866 = vadd.f32 %v865, %v855
      %v867 = vadd.f32 %v866, %v856
      %v868 = vadd.f32 %v867, %v857
      %v869 = vadd.f32 %v868, %v858
      %v870 = vadd.f32 %v869, %v859
      %v871 = vadd.f32 %v870, %v860
      %v872 = vadd.f32 %v871, %v861
      %v873 = vadd.f32 %v872, %v862
      %v874 = vadd.f32 %v873, %v863
      %875 = vadd.xlane.f32.xlu0 %v874
      %v876 = vpop.xlane.xlu0 %875
      %v877 = vrot.slane %v876, 4
      %v878 = vadd.f32 %v876, %v877
      %v879 = vrot.slane %v878, 2
      %v880 = vadd.f32 %v878, %v879
      %v881 = vrot.slane %v880, 1
      %v882 = vadd.f32 %v880, %v881
      %s883 = vtos %v882
      %s884 = sadd.f32 %s883, 0.0
      %885 = vrot.lane.b32.xlu0 %v208, 120
      %v886 = vpop.permute.xlu0 %885
      %887 = vrot.lane.b32.xlu0 %v209, 120
      %v888 = vpop.permute.xlu0 %887
      %889 = vrot.lane.b32.xlu0 %v210, 120
      %v890 = vpop.permute.xlu0 %889
      %891 = vrot.lane.b32.xlu0 %v211, 120
      %v892 = vpop.permute.xlu0 %891
      %893 = vrot.lane.b32.xlu0 %v212, 120
      %v894 = vpop.permute.xlu0 %893
      %895 = vrot.lane.b32.xlu0 %v213, 120
      %v896 = vpop.permute.xlu0 %895
      %v903 = vsel %vm510, %v886, 0.0
      %v904 = vsel %vm510, %v888, 0.0
      %v905 = vadd.f32 %v903, %v904
      %v906 = vsel %vm510, %v890, 0.0
      %v907 = vadd.f32 %v905, %v906
      %v908 = vsel %vm510, %v892, 0.0
      %v909 = vadd.f32 %v907, %v908
      %v910 = vsel %vm510, %v894, 0.0
      %v911 = vadd.f32 %v909, %v910
      %v912 = vsel %vm510, %v896, 0.0
      %v913 = vadd.f32 %v911, %v912
      %914 = vadd.xlane.f32.xlu0 %v913
      %v915 = vpop.xlane.xlu0 %914
      %v916 = vrot.slane %v915, 4
      %v917 = vadd.f32 %v915, %v916
      %v918 = vrot.slane %v917, 2
      %v919 = vadd.f32 %v917, %v918
      %v920 = vrot.slane %v919, 1
      %v921 = vadd.f32 %v919, %v920
      %s922 = vtos %v921
      %s923 = sadd.f32 %s922, 0.0
      %vm924 = vcmp.eq.s32.totalorder %v437, 0
      %v925 = vstv %s337
      %v926 = vsel %vm924, %v925, 0.0
      %vm927 = vcmp.eq.s32.totalorder %v437, 1
      %v928 = vstv %s531
      %v929 = vsel %vm927, %v928, 0.0
      %v930 = vadd.f32 %v926, %v929
      %vm931 = vcmp.eq.s32.totalorder %v437, 2
      %v932 = vstv %s884
      %v933 = vsel %vm931, %v932, 0.0
      %v934 = vadd.f32 %v930, %v933
      %vm935 = vcmp.eq.s32.totalorder %v437, 3
      %v936 = vstv %s923
      %v937 = vsel %vm935, %v936, 0.0
      %v938 = vadd.f32 %v934, %v937
      %939 = vst [vmem:[%s206] sm:$0x1] %v938
      %p940 = scmp.lt.s32.totalorder %s14, 1
      %s941 = scalar_select %p940, %s14, 1
      %s942 = scalar_lea.vmem %s3, %s941
      // Predicated region
      $region33: #{netloss_forward.3} parent=31 // pred_check
        %p943 = pneg %p110
      $region34: #{netloss_forward.3} parent=31 // pred_check_branch
        %945 = sbr.rel (%p943) target = $region36
      $region35: #{netloss_forward.3} parent=31 // pred_region
        _
      $region36: #{netloss_forward.3} parent=31 // pred_fallthru
        _
    $region32: #{netloss_forward.3} parent=5 // pred_fallthru
      _
    %p946 = scmp.le.s32.totalorder 2, %s9
    // Predicated region
    $region37: #{netloss_forward.3} parent=5 // pred_check
      %p947 = pneg %p946
    $region38: #{netloss_forward.3} parent=5 // pred_check_branch
      %949 = sbr.rel (%p947) target = $region40
    $region39: #{netloss_forward.3} parent=5 // pred_region
      %s950 = ssub.s32 %s9, 2
      // Predicated region
      $region41: #{netloss_forward.3} parent=39 // pred_check
        %p951 = pneg %p116
      $region42: #{netloss_forward.3} parent=39 // pred_check_branch
        %953 = sbr.rel (%p951) target = $region44
      $region43: #{netloss_forward.3} parent=39 // pred_region
        %p954 = scmp.lt.s32.totalorder %s15, 1
        %s955 = scalar_select %p954, %s15, 1
        %s956 = scalar_lea.vmem %s3, %s955
      $region44: #{netloss_forward.3} parent=39 // pred_fallthru
        _
    $region40: #{netloss_forward.3} parent=5 // pred_fallthru
      _
  $region6: #{netloss_forward.3} parent=0 // loop_footer
    %s13 = sadd.s32 1, %s9
  $region7: #{netloss_forward.3} parent=0 // loop_footer_branch
    %8 = sbr.rel target = $region3
  $region8: #{netloss_forward.3} parent=0 // loop_exit
    _

</llo_original>
